<compile_context>
chip_gen: v6e
topology: v6e:2x2x1
jax: 0.10.0
libtpu: 0.0.40
codegen_flags: <defaults>
</compile_context>

<pallas_src>
import functools

import jax
import jax.numpy as jnp
from jax import lax
from jax.experimental import pallas as pl
from jax.experimental.pallas import tpu as pltpu


# ----------------------------------------------------------------------------
# Kernel 1: fused (previous BN+ReLU) -> zero-pad -> 3x3 conv -> partial BN stats
# ----------------------------------------------------------------------------
def _conv_bn_stats_kernel(x_ref, scale_ref, shift_ref, w_ref, y_ref, stats_ref,
                          xp_scr, col_scr, *,
                          Hin, Win, Cin, Cout, K, stride, pad, Ho, Wo, pre_relu):
    # x_ref    : (1, Cin, Hin*Win)  raw previous-stage output (channel-major)
    # scale_ref: (Cin, 1)           previous BN affine (ones/zeros for stage 1)
    # shift_ref: (Cin, 1)
    # w_ref    : (K*K*Cin, Cout)    conv weight as an im2col matrix
    # y_ref    : (1, Cout, Ho*Wo)   raw conv output (channel-major, lane-dense)
    # stats_ref: (1, 2, Cout)       per-sample per-channel [sum, sum of squares]
    # xp_scr   : (Hp, Wp, Cin)      VMEM zero-padded channels-last input tile
    # col_scr  : (Ho*Wo, K*K*Cin)   VMEM im2col slab
    Hp, Wp = Hin + 2 * pad, Win + 2 * pad

    # (1) previous-stage BN + ReLU fused into this kernel (identity for stage 1)
    a_cm = x_ref[0] * scale_ref[...] + shift_ref[...]            # (Cin, Hin*Win)
    if pre_relu:
        a_cm = jnp.maximum(a_cm, 0.0)

    # (2) channels-last spatial view + in-kernel zero padding (VMEM scratch)
    a = a_cm.T.reshape(Hin, Win, Cin)                            # (Hin, Win, Cin)
    xp_scr[...] = jnp.zeros((Hp, Wp, Cin), jnp.float32)
    xp_scr[pad:pad + Hin, pad:pad + Win, :] = a

    # (3) im2col slab: one window per tap (strided windows for stride=2, strides
    #     only on non-lane dims), a single leading-dim reshape per tap, then one
    #     MXU dot with contraction dim K*K*Cin.
    t = 0
    for kh in range(K):
        for kw in range(K):
            if stride == 1:
                patch = xp_scr[kh:kh + Ho, kw:kw + Wo, :]
            else:
                patch = xp_scr[pl.ds(kh, Ho, stride), pl.ds(kw, Wo, stride), :]
            col_scr[:, t * Cin:(t + 1) * Cin] = patch.reshape(Ho * Wo, Cin)
            t += 1
    y2d = jnp.dot(col_scr[...], w_ref[...],
                  preferred_element_type=jnp.float32)            # (Ho*Wo, Cout)

    # (4) fused partial batch-norm statistics (avoids re-reading y from HBM)
    stats_ref[0, 0:1, :] = jnp.sum(y2d, axis=0, keepdims=True)
    stats_ref[0, 1:2, :] = jnp.sum(y2d * y2d, axis=0, keepdims=True)

    # (5) lane-dense store: (Cout, Ho*Wo) == flattened NCHW
    y_ref[0] = y2d.T.astype(y_ref.dtype)


def conv_bn_stats(x_cm, pre_scale, pre_shift, w_mat, *,
                  Hin, Win, stride, pad=1, pre_relu):
    N, Cin, _ = x_cm.shape
    KKC, Cout = w_mat.shape
    K = 3
    assert KKC == K * K * Cin
    Ho = (Hin + 2 * pad - K) // stride + 1
    Wo = (Win + 2 * pad - K) // stride + 1
    Hp, Wp = Hin + 2 * pad, Win + 2 * pad

    kernel = functools.partial(
        _conv_bn_stats_kernel, Hin=Hin, Win=Win, Cin=Cin, Cout=Cout, K=K,
        stride=stride, pad=pad, Ho=Ho, Wo=Wo, pre_relu=pre_relu)

    y, stats = pl.pallas_call(
        kernel,
        out_shape=(jax.ShapeDtypeStruct((N, Cout, Ho * Wo), jnp.float32),
                   jax.ShapeDtypeStruct((N, 2, Cout), jnp.float32)),
        grid=(N,),
        in_specs=[
            pl.BlockSpec((1, Cin, Hin * Win), lambda n: (n, 0, 0)),
            pl.BlockSpec((Cin, 1), lambda n: (0, 0)),
            pl.BlockSpec((Cin, 1), lambda n: (0, 0)),
            pl.BlockSpec((K * K * Cin, Cout), lambda n: (0, 0)),
        ],
        out_specs=(
            pl.BlockSpec((1, Cout, Ho * Wo), lambda n: (n, 0, 0)),
            pl.BlockSpec((1, 2, Cout), lambda n: (n, 0, 0)),
        ),
        scratch_shapes=[
            pltpu.VMEM((Hp, Wp, Cin), jnp.float32),
            pltpu.VMEM((Ho * Wo, K * K * Cin), jnp.float32),
        ],
        compiler_params=pltpu.CompilerParams(
            dimension_semantics=("parallel",)),
    )(x_cm, pre_scale, pre_shift, w_mat)
    return y, stats, (Ho, Wo)


# ----------------------------------------------------------------------------
# Kernel 2: final BN + ReLU (elementwise, lane-dense, tiled per sample)
# ----------------------------------------------------------------------------
def _bn_relu_kernel(y_ref, scale_ref, shift_ref, o_ref):
    o_ref[0] = jnp.maximum(y_ref[0] * scale_ref[...] + shift_ref[...], 0.0)


def bn_relu_apply(y_cm, scale, shift):
    N, C, M = y_cm.shape
    # For realistic sizes, add an M-tile grid axis so no single block is
    # unbounded in N*H*W (v7x VMEM); one sample per step is plenty here.
    return pl.pallas_call(
        _bn_relu_kernel,
        out_shape=jax.ShapeDtypeStruct((N, C, M), jnp.float32),
        grid=(N,),
        in_specs=[
            pl.BlockSpec((1, C, M), lambda n: (n, 0, 0)),
            pl.BlockSpec((C, 1), lambda n: (0, 0)),
            pl.BlockSpec((C, 1), lambda n: (0, 0)),
        ],
        out_specs=pl.BlockSpec((1, C, M), lambda n: (n, 0, 0)),
        compiler_params=pltpu.CompilerParams(
            dimension_semantics=("parallel",)),
    )(y_cm, scale, shift)


# ----------------------------------------------------------------------------
# Module wrapper (NCHW in / NCHW out, like the PyTorch module)
# ----------------------------------------------------------------------------
def _bn_affine(stats, gamma, beta, count, eps):
    # stats: (N, 2, C) per-sample [sum, sumsq]; biased batch variance (train mode)
    s = jnp.sum(stats[:, 0, :], axis=0)
    sq = jnp.sum(stats[:, 1, :], axis=0)
    mean = s / count
    var = jnp.maximum(sq / count - mean * mean, 0.0)
    scale = gamma * lax.rsqrt(var + eps)
    shift = beta - mean * scale
    return scale.reshape(-1, 1), shift.reshape(-1, 1)


def double_conv2_forward(x_nchw, w1, gamma1, beta1, w2, gamma2, beta2, eps=1e-5):
    N, Cin, H, W = x_nchw.shape
    C = w1.shape[0]
    K = 3

    # weights as im2col matrices: (Cout, Cin, K, K) -> (K*K*Cin, Cout)
    w1_mat = jnp.transpose(w1, (2, 3, 1, 0)).reshape(K * K * Cin, C)
    w2_mat = jnp.transpose(w2, (2, 3, 1, 0)).reshape(K * K * C, C)

    # stage 1: conv(3x3, s2, p1) + fused BN statistics
    x_cm = x_nchw.reshape(N, Cin, H * W)                         # flattened NCHW
    one = jnp.ones((Cin, 1), jnp.float32)
    zero = jnp.zeros((Cin, 1), jnp.float32)
    y1, st1, (H1, W1) = conv_bn_stats(x_cm, one, zero, w1_mat,
                                      Hin=H, Win=W, stride=2, pre_relu=False)
    s1, b1 = _bn_affine(st1, gamma1, beta1, N * H1 * W1, eps)

    # stage 2: BN1 + ReLU fused into conv(3x3, s1, p1) + fused BN statistics
    y2, st2, (H2, W2) = conv_bn_stats(y1, s1, b1, w2_mat,
                                      Hin=H1, Win=W1, stride=1, pre_relu=True)
    s2, b2 = _bn_affine(st2, gamma2, beta2, N * H2 * W2, eps)

    # final BN2 + ReLU
    out_cm = bn_relu_apply(y2, s2, b2)                           # (N, C, H2*W2)
    return out_cm.reshape(N, C, H2, W2)


# ----------------------------------------------------------------------------
# Pure-JAX reference (correctness sanity check)
# ----------------------------------------------------------------------------
def double_conv2_reference(x, w1, g1, b1, w2, g2, b2, eps=1e-5):
    def bn_relu(y, g, b):
        mean = jnp.mean(y, axis=(0, 2, 3), keepdims=True)
        var = jnp.mean((y - mean) ** 2, axis=(0, 2, 3), keepdims=True)
        yn = (y - mean) * lax.rsqrt(var + eps)
        yn = yn * g.reshape(1, -1, 1, 1) + b.reshape(1, -1, 1, 1)
        return jnp.maximum(yn, 0.0)

    y = lax.conv_general_dilated(x, w1, (2, 2), ((1, 1), (1, 1)),
                                 dimension_numbers=("NCHW", "OIHW", "NCHW"))
    y = bn_relu(y, g1, b1)
    y = lax.conv_general_dilated(y, w2, (1, 1), ((1, 1), (1, 1)),
                                 dimension_numbers=("NCHW", "OIHW", "NCHW"))
    return bn_relu(y, g2, b2)


if __name__ == "__main__":
    # DoubleConv2(in_channels=4, out_channels=8) on a (2, 4, 16, 16) input
    in_channels, out_channels = 4, 8
    N, H, W = 2, 16, 16
    K = 3

    key = jax.random.PRNGKey(0)
    kx, k1, k2 = jax.random.split(key, 3)

    x = jax.random.normal(kx, (N, in_channels, H, W), dtype=jnp.float32)

    std1 = (2.0 / (in_channels * K * K)) ** 0.5
    std2 = (2.0 / (out_channels * K * K)) ** 0.5
    w1 = std1 * jax.random.normal(k1, (out_channels, in_channels, K, K),
                                  dtype=jnp.float32)
    w2 = std2 * jax.random.normal(k2, (out_channels, out_channels, K, K),
                                  dtype=jnp.float32)

    # BatchNorm2d default init: weight=1, bias=0 (training-mode batch stats)
    g1 = jnp.ones((out_channels,), jnp.float32)
    b1 = jnp.zeros((out_channels,), jnp.float32)
    g2 = jnp.ones((out_channels,), jnp.float32)
    b2 = jnp.zeros((out_channels,), jnp.float32)

    fwd = jax.jit(double_conv2_forward)
    out = jax.block_until_ready(fwd(x, w1, g1, b1, w2, g2, b2))

    ref = jax.block_until_ready(double_conv2_reference(x, w1, g1, b1, w2, g2, b2))

    assert out.shape == (N, out_channels, H // 2, W // 2), out.shape
    assert jnp.allclose(out, ref, rtol=1e-2, atol=1e-2), float(
        jnp.max(jnp.abs(out - ref)))

    print("KERNEL_OK")
</pallas_src>

<mosaic_0001>
module attributes {stable_mosaic.version = 11 : i64} {
  func.func @_conv_bn_stats_kernel(%arg0: i32, %arg1: memref<1x4x256xf32, #tpu.memory_space<vmem>>, %arg2: memref<4x1xf32, #tpu.memory_space<vmem>>, %arg3: memref<4x1xf32, #tpu.memory_space<vmem>>, %arg4: memref<36x8xf32, #tpu.memory_space<vmem>>, %arg5: memref<1x8x64xf32, #tpu.memory_space<vmem>>, %arg6: memref<1x2x8xf32, #tpu.memory_space<vmem>>, %arg7: memref<18x18x4xf32, #tpu.memory_space<vmem>>, %arg8: memref<64x36xf32, #tpu.memory_space<vmem>>) attributes {dimension_semantics = [#tpu.dimension_semantics<parallel>], iteration_bounds = array<i64: 2>, scalar_prefetch = 0 : i64, scratch_operands = 2 : i64, tpu.core_type = #tpu.core_type<tc>, window_params = [{transform_indices = @transform_0, window_bounds = array<i64: 1, 4, 256>}, {pipeline_mode = #tpu.pipeline_mode<synchronous>, transform_indices = @transform_1, window_bounds = array<i64: 4, 1>}, {pipeline_mode = #tpu.pipeline_mode<synchronous>, transform_indices = @transform_2, window_bounds = array<i64: 4, 1>}, {pipeline_mode = #tpu.pipeline_mode<synchronous>, transform_indices = @transform_3, window_bounds = array<i64: 36, 8>}, {transform_indices = @transform_4, window_bounds = array<i64: 1, 8, 64>}, {transform_indices = @transform_5, window_bounds = array<i64: 1, 2, 8>}]} {
    %c0 = arith.constant 0 : index
    %c0_0 = arith.constant 0 : index
    %c0_1 = arith.constant 0 : index
    %0 = vector.load %arg1[%c0, %c0_0, %c0_1] : memref<1x4x256xf32, #tpu.memory_space<vmem>>, vector<1x4x256xf32>
    %1 = vector.shape_cast %0 : vector<1x4x256xf32> to vector<4x256xf32>
    %c0_2 = arith.constant 0 : index
    %c0_3 = arith.constant 0 : index
    %2 = vector.load %arg2[%c0_2, %c0_3] : memref<4x1xf32, #tpu.memory_space<vmem>>, vector<4x1xf32>
    %3 = vector.broadcast %2 : vector<4x1xf32> to vector<4x256xf32>
    %4 = arith.mulf %1, %3 : vector<4x256xf32>
    %c0_4 = arith.constant 0 : index
    %c0_5 = arith.constant 0 : index
    %5 = vector.load %arg3[%c0_4, %c0_5] : memref<4x1xf32, #tpu.memory_space<vmem>>, vector<4x1xf32>
    %6 = vector.broadcast %5 : vector<4x1xf32> to vector<4x256xf32>
    %7 = arith.addf %4, %6 : vector<4x256xf32>
    %8 = tpu.transpose %7, [1, 0] : vector<4x256xf32> -> vector<256x4xf32>
    %9 = vector.shape_cast %8 : vector<256x4xf32> to vector<16x16x4xf32>
    %cst = arith.constant 0.000000e+00 : f32
    %10 = vector.broadcast %cst : f32 to vector<18x18x4xf32>
    %c0_6 = arith.constant 0 : index
    %c0_7 = arith.constant 0 : index
    %c0_8 = arith.constant 0 : index
    %11 = vector.load %arg7[%c0_6, %c0_7, %c0_8] : memref<18x18x4xf32, #tpu.memory_space<vmem>>, vector<18x18x4xf32>
    tpu.vector_store %arg7[%c0_6, %c0_7, %c0_8], %10 {strides = array<i32>} : memref<18x18x4xf32, #tpu.memory_space<vmem>>, vector<18x18x4xf32>,
    %c1 = arith.constant 1 : index
    %c1_9 = arith.constant 1 : index
    %c0_10 = arith.constant 0 : index
    %12 = vector.load %arg7[%c1, %c1_9, %c0_10] : memref<18x18x4xf32, #tpu.memory_space<vmem>>, vector<16x16x4xf32>
    tpu.vector_store %arg7[%c1, %c1_9, %c0_10], %9 {strides = array<i32>} : memref<18x18x4xf32, #tpu.memory_space<vmem>>, vector<16x16x4xf32>,
    %c0_11 = arith.constant 0 : index
    %c0_12 = arith.constant 0 : index
    %c0_13 = arith.constant 0 : index
    %13 = tpu.strided_load %arg7[%c0_11, %c0_12, %c0_13] {strides = array<i32: 2, 2, 1>} : memref<18x18x4xf32, #tpu.memory_space<vmem>>, vector<8x8x4xf32>
    %14 = vector.shape_cast %13 : vector<8x8x4xf32> to vector<64x4xf32>
    %c0_14 = arith.constant 0 : index
    %c0_15 = arith.constant 0 : index
    %15 = vector.load %arg8[%c0_14, %c0_15] : memref<64x36xf32, #tpu.memory_space<vmem>>, vector<64x4xf32>
    tpu.vector_store %arg8[%c0_14, %c0_15], %14 {strides = array<i32>} : memref<64x36xf32, #tpu.memory_space<vmem>>, vector<64x4xf32>,
    %c0_16 = arith.constant 0 : index
    %c1_17 = arith.constant 1 : index
    %c0_18 = arith.constant 0 : index
    %16 = tpu.strided_load %arg7[%c0_16, %c1_17, %c0_18] {strides = array<i32: 2, 2, 1>} : memref<18x18x4xf32, #tpu.memory_space<vmem>>, vector<8x8x4xf32>
    %17 = vector.shape_cast %16 : vector<8x8x4xf32> to vector<64x4xf32>
    %c0_19 = arith.constant 0 : index
    %c4 = arith.constant 4 : index
    %18 = vector.load %arg8[%c0_19, %c4] : memref<64x36xf32, #tpu.memory_space<vmem>>, vector<64x4xf32>
    tpu.vector_store %arg8[%c0_19, %c4], %17 {strides = array<i32>} : memref<64x36xf32, #tpu.memory_space<vmem>>, vector<64x4xf32>,
    %c0_20 = arith.constant 0 : index
    %c2 = arith.constant 2 : index
    %c0_21 = arith.constant 0 : index
    %19 = tpu.strided_load %arg7[%c0_20, %c2, %c0_21] {strides = array<i32: 2, 2, 1>} : memref<18x18x4xf32, #tpu.memory_space<vmem>>, vector<8x8x4xf32>
    %20 = vector.shape_cast %19 : vector<8x8x4xf32> to vector<64x4xf32>
    %c0_22 = arith.constant 0 : index
    %c8 = arith.constant 8 : index
    %21 = vector.load %arg8[%c0_22, %c8] : memref<64x36xf32, #tpu.memory_space<vmem>>, vector<64x4xf32>
    tpu.vector_store %arg8[%c0_22, %c8], %20 {strides = array<i32>} : memref<64x36xf32, #tpu.memory_space<vmem>>, vector<64x4xf32>,
    %c1_23 = arith.constant 1 : index
    %c0_24 = arith.constant 0 : index
    %c0_25 = arith.constant 0 : index
    %22 = tpu.strided_load %arg7[%c1_23, %c0_24, %c0_25] {strides = array<i32: 2, 2, 1>} : memref<18x18x4xf32, #tpu.memory_space<vmem>>, vector<8x8x4xf32>
    %23 = vector.shape_cast %22 : vector<8x8x4xf32> to vector<64x4xf32>
    %c0_26 = arith.constant 0 : index
    %c12 = arith.constant 12 : index
    %24 = vector.load %arg8[%c0_26, %c12] : memref<64x36xf32, #tpu.memory_space<vmem>>, vector<64x4xf32>
    tpu.vector_store %arg8[%c0_26, %c12], %23 {strides = array<i32>} : memref<64x36xf32, #tpu.memory_space<vmem>>, vector<64x4xf32>,
    %c1_27 = arith.constant 1 : index
    %c1_28 = arith.constant 1 : index
    %c0_29 = arith.constant 0 : index
    %25 = tpu.strided_load %arg7[%c1_27, %c1_28, %c0_29] {strides = array<i32: 2, 2, 1>} : memref<18x18x4xf32, #tpu.memory_space<vmem>>, vector<8x8x4xf32>
    %26 = vector.shape_cast %25 : vector<8x8x4xf32> to vector<64x4xf32>
    %c0_30 = arith.constant 0 : index
    %c16 = arith.constant 16 : index
    %27 = vector.load %arg8[%c0_30, %c16] : memref<64x36xf32, #tpu.memory_space<vmem>>, vector<64x4xf32>
    tpu.vector_store %arg8[%c0_30, %c16], %26 {strides = array<i32>} : memref<64x36xf32, #tpu.memory_space<vmem>>, vector<64x4xf32>,
    %c1_31 = arith.constant 1 : index
    %c2_32 = arith.constant 2 : index
    %c0_33 = arith.constant 0 : index
    %28 = tpu.strided_load %arg7[%c1_31, %c2_32, %c0_33] {strides = array<i32: 2, 2, 1>} : memref<18x18x4xf32, #tpu.memory_space<vmem>>, vector<8x8x4xf32>
    %29 = vector.shape_cast %28 : vector<8x8x4xf32> to vector<64x4xf32>
    %c0_34 = arith.constant 0 : index
    %c20 = arith.constant 20 : index
    %30 = vector.load %arg8[%c0_34, %c20] : memref<64x36xf32, #tpu.memory_space<vmem>>, vector<64x4xf32>
    tpu.vector_store %arg8[%c0_34, %c20], %29 {strides = array<i32>} : memref<64x36xf32, #tpu.memory_space<vmem>>, vector<64x4xf32>,
    %c2_35 = arith.constant 2 : index
    %c0_36 = arith.constant 0 : index
    %c0_37 = arith.constant 0 : index
    %31 = tpu.strided_load %arg7[%c2_35, %c0_36, %c0_37] {strides = array<i32: 2, 2, 1>} : memref<18x18x4xf32, #tpu.memory_space<vmem>>, vector<8x8x4xf32>
    %32 = vector.shape_cast %31 : vector<8x8x4xf32> to vector<64x4xf32>
    %c0_38 = arith.constant 0 : index
    %c24 = arith.constant 24 : index
    %33 = vector.load %arg8[%c0_38, %c24] : memref<64x36xf32, #tpu.memory_space<vmem>>, vector<64x4xf32>
    tpu.vector_store %arg8[%c0_38, %c24], %32 {strides = array<i32>} : memref<64x36xf32, #tpu.memory_space<vmem>>, vector<64x4xf32>,
    %c2_39 = arith.constant 2 : index
    %c1_40 = arith.constant 1 : index
    %c0_41 = arith.constant 0 : index
    %34 = tpu.strided_load %arg7[%c2_39, %c1_40, %c0_41] {strides = array<i32: 2, 2, 1>} : memref<18x18x4xf32, #tpu.memory_space<vmem>>, vector<8x8x4xf32>
    %35 = vector.shape_cast %34 : vector<8x8x4xf32> to vector<64x4xf32>
    %c0_42 = arith.constant 0 : index
    %c28 = arith.constant 28 : index
    %36 = vector.load %arg8[%c0_42, %c28] : memref<64x36xf32, #tpu.memory_space<vmem>>, vector<64x4xf32>
    tpu.vector_store %arg8[%c0_42, %c28], %35 {strides = array<i32>} : memref<64x36xf32, #tpu.memory_space<vmem>>, vector<64x4xf32>,
    %c2_43 = arith.constant 2 : index
    %c2_44 = arith.constant 2 : index
    %c0_45 = arith.constant 0 : index
    %37 = tpu.strided_load %arg7[%c2_43, %c2_44, %c0_45] {strides = array<i32: 2, 2, 1>} : memref<18x18x4xf32, #tpu.memory_space<vmem>>, vector<8x8x4xf32>
    %38 = vector.shape_cast %37 : vector<8x8x4xf32> to vector<64x4xf32>
    %c0_46 = arith.constant 0 : index
    %c32 = arith.constant 32 : index
    %39 = vector.load %arg8[%c0_46, %c32] : memref<64x36xf32, #tpu.memory_space<vmem>>, vector<64x4xf32>
    tpu.vector_store %arg8[%c0_46, %c32], %38 {strides = array<i32>} : memref<64x36xf32, #tpu.memory_space<vmem>>, vector<64x4xf32>,
    %c0_47 = arith.constant 0 : index
    %c0_48 = arith.constant 0 : index
    %40 = vector.load %arg8[%c0_47, %c0_48] : memref<64x36xf32, #tpu.memory_space<vmem>>, vector<64x36xf32>
    %c0_49 = arith.constant 0 : index
    %c0_50 = arith.constant 0 : index
    %41 = vector.load %arg4[%c0_49, %c0_50] : memref<36x8xf32, #tpu.memory_space<vmem>>, vector<36x8xf32>
    %cst_51 = arith.constant dense<0.000000e+00> : vector<64x8xf32>
    %42 = tpu.matmul %40, %41, %cst_51 {dimension_numbers = #tpu.dot_dimension_numbers<[1], [0], [0], [1], [0, 0, 1, 1], [], []>} : vector<64x36xf32>, vector<36x8xf32>, vector<64x8xf32> -> vector<64x8xf32>
    %cst_52 = arith.constant dense<0.000000e+00> : vector<8xf32>
    %43 = vector.multi_reduction <add>, %42, %cst_52 [0] : vector<64x8xf32> to vector<8xf32>
    %44 = vector.shape_cast %43 : vector<8xf32> to vector<1x8xf32>
    %c0_53 = arith.constant 0 : index
    %c0_54 = arith.constant 0 : index
    %c0_55 = arith.constant 0 : index
    %45 = vector.load %arg6[%c0_53, %c0_54, %c0_55] : memref<1x2x8xf32, #tpu.memory_space<vmem>>, vector<1x1x8xf32>
    %46 = vector.shape_cast %45 : vector<1x1x8xf32> to vector<1x8xf32>
    %47 = vector.shape_cast %44 : vector<1x8xf32> to vector<1x1x8xf32>
    tpu.vector_store %arg6[%c0_53, %c0_54, %c0_55], %47 {strides = array<i32>} : memref<1x2x8xf32, #tpu.memory_space<vmem>>, vector<1x1x8xf32>,
    %48 = arith.mulf %42, %42 : vector<64x8xf32>
    %cst_56 = arith.constant dense<0.000000e+00> : vector<8xf32>
    %49 = vector.multi_reduction <add>, %48, %cst_56 [0] : vector<64x8xf32> to vector<8xf32>
    %50 = vector.shape_cast %49 : vector<8xf32> to vector<1x8xf32>
    %c0_57 = arith.constant 0 : index
    %c1_58 = arith.constant 1 : index
    %c0_59 = arith.constant 0 : index
    %51 = vector.load %arg6[%c0_57, %c1_58, %c0_59] : memref<1x2x8xf32, #tpu.memory_space<vmem>>, vector<1x1x8xf32>
    %52 = vector.shape_cast %51 : vector<1x1x8xf32> to vector<1x8xf32>
    %53 = vector.shape_cast %50 : vector<1x8xf32> to vector<1x1x8xf32>
    tpu.vector_store %arg6[%c0_57, %c1_58, %c0_59], %53 {strides = array<i32>} : memref<1x2x8xf32, #tpu.memory_space<vmem>>, vector<1x1x8xf32>,
    %54 = tpu.transpose %42, [1, 0] : vector<64x8xf32> -> vector<8x64xf32>
    %c0_60 = arith.constant 0 : index
    %c0_61 = arith.constant 0 : index
    %c0_62 = arith.constant 0 : index
    %55 = vector.load %arg5[%c0_60, %c0_61, %c0_62] : memref<1x8x64xf32, #tpu.memory_space<vmem>>, vector<1x8x64xf32>
    %56 = vector.shape_cast %55 : vector<1x8x64xf32> to vector<8x64xf32>
    %57 = vector.shape_cast %54 : vector<8x64xf32> to vector<1x8x64xf32>
    tpu.vector_store %arg5[%c0_60, %c0_61, %c0_62], %57 {strides = array<i32>} : memref<1x8x64xf32, #tpu.memory_space<vmem>>, vector<1x8x64xf32>,
    return
  }
  func.func @transform_0(%arg0: i32) -> (i32, i32, i32) {
    %c0_i32 = arith.constant 0 : i32
    %c0_i32_0 = arith.constant 0 : i32
    %c0_i32_1 = arith.constant 0 : i32
    return %arg0, %c0_i32, %c0_i32_0 : i32, i32, i32
  }
  func.func @transform_1(%arg0: i32) -> (i32, i32) {
    %c0_i32 = arith.constant 0 : i32
    %c0_i32_0 = arith.constant 0 : i32
    %c0_i32_1 = arith.constant 0 : i32
    return %c0_i32, %c0_i32_0 : i32, i32
  }
  func.func @transform_2(%arg0: i32) -> (i32, i32) {
    %c0_i32 = arith.constant 0 : i32
    %c0_i32_0 = arith.constant 0 : i32
    %c0_i32_1 = arith.constant 0 : i32
    return %c0_i32, %c0_i32_0 : i32, i32
  }
  func.func @transform_3(%arg0: i32) -> (i32, i32) {
    %c0_i32 = arith.constant 0 : i32
    %c0_i32_0 = arith.constant 0 : i32
    %c0_i32_1 = arith.constant 0 : i32
    return %c0_i32, %c0_i32_0 : i32, i32
  }
  func.func @transform_4(%arg0: i32) -> (i32, i32, i32) {
    %c0_i32 = arith.constant 0 : i32
    %c0_i32_0 = arith.constant 0 : i32
    %c0_i32_1 = arith.constant 0 : i32
    return %arg0, %c0_i32, %c0_i32_0 : i32, i32, i32
  }
  func.func @transform_5(%arg0: i32) -> (i32, i32, i32) {
    %c0_i32 = arith.constant 0 : i32
    %c0_i32_0 = arith.constant 0 : i32
    %c0_i32_1 = arith.constant 0 : i32
    return %arg0, %c0_i32, %c0_i32_0 : i32, i32, i32
  }
}

module attributes {stable_mosaic.version = 11 : i64} {
  func.func @_bn_relu_kernel(%arg0: i32, %arg1: memref<1x8x64xf32, #tpu.memory_space<vmem>>, %arg2: memref<8x1xf32, #tpu.memory_space<vmem>>, %arg3: memref<8x1xf32, #tpu.memory_space<vmem>>, %arg4: memref<1x8x64xf32, #tpu.memory_space<vmem>>) attributes {dimension_semantics = [#tpu.dimension_semantics<parallel>], iteration_bounds = array<i64: 2>, scalar_prefetch = 0 : i64, scratch_operands = 0 : i64, tpu.core_type = #tpu.core_type<tc>, window_params = [{transform_indices = @transform_0, window_bounds = array<i64: 1, 8, 64>}, {pipeline_mode = #tpu.pipeline_mode<synchronous>, transform_indices = @transform_1, window_bounds = array<i64: 8, 1>}, {pipeline_mode = #tpu.pipeline_mode<synchronous>, transform_indices = @transform_2, window_bounds = array<i64: 8, 1>}, {transform_indices = @transform_3, window_bounds = array<i64: 1, 8, 64>}]} {
    %c0 = arith.constant 0 : index
    %c0_0 = arith.constant 0 : index
    %c0_1 = arith.constant 0 : index
    %0 = vector.load %arg1[%c0, %c0_0, %c0_1] : memref<1x8x64xf32, #tpu.memory_space<vmem>>, vector<1x8x64xf32>
    %1 = vector.shape_cast %0 : vector<1x8x64xf32> to vector<8x64xf32>
    %c0_2 = arith.constant 0 : index
    %c0_3 = arith.constant 0 : index
    %2 = vector.load %arg2[%c0_2, %c0_3] : memref<8x1xf32, #tpu.memory_space<vmem>>, vector<8x1xf32>
    %3 = vector.broadcast %2 : vector<8x1xf32> to vector<8x64xf32>
    %4 = arith.mulf %1, %3 : vector<8x64xf32>
    %c0_4 = arith.constant 0 : index
    %c0_5 = arith.constant 0 : index
    %5 = vector.load %arg3[%c0_4, %c0_5] : memref<8x1xf32, #tpu.memory_space<vmem>>, vector<8x1xf32>
    %6 = vector.broadcast %5 : vector<8x1xf32> to vector<8x64xf32>
    %7 = arith.addf %4, %6 : vector<8x64xf32>
    %cst = arith.constant 0.000000e+00 : f32
    %8 = vector.broadcast %cst : f32 to vector<8x64xf32>
    %9 = arith.maximumf %7, %8 : vector<8x64xf32>
    %c0_6 = arith.constant 0 : index
    %c0_7 = arith.constant 0 : index
    %c0_8 = arith.constant 0 : index
    %10 = vector.load %arg4[%c0_6, %c0_7, %c0_8] : memref<1x8x64xf32, #tpu.memory_space<vmem>>, vector<1x8x64xf32>
    %11 = vector.shape_cast %10 : vector<1x8x64xf32> to vector<8x64xf32>
    %12 = vector.shape_cast %9 : vector<8x64xf32> to vector<1x8x64xf32>
    tpu.vector_store %arg4[%c0_6, %c0_7, %c0_8], %12 {strides = array<i32>} : memref<1x8x64xf32, #tpu.memory_space<vmem>>, vector<1x8x64xf32>,
    return
  }
  func.func @transform_0(%arg0: i32) -> (i32, i32, i32) {
    %c0_i32 = arith.constant 0 : i32
    %c0_i32_0 = arith.constant 0 : i32
    %c0_i32_1 = arith.constant 0 : i32
    return %arg0, %c0_i32, %c0_i32_0 : i32, i32, i32
  }
  func.func @transform_1(%arg0: i32) -> (i32, i32) {
    %c0_i32 = arith.constant 0 : i32
    %c0_i32_0 = arith.constant 0 : i32
    %c0_i32_1 = arith.constant 0 : i32
    return %c0_i32, %c0_i32_0 : i32, i32
  }
  func.func @transform_2(%arg0: i32) -> (i32, i32) {
    %c0_i32 = arith.constant 0 : i32
    %c0_i32_0 = arith.constant 0 : i32
    %c0_i32_1 = arith.constant 0 : i32
    return %c0_i32, %c0_i32_0 : i32, i32
  }
  func.func @transform_3(%arg0: i32) -> (i32, i32, i32) {
    %c0_i32 = arith.constant 0 : i32
    %c0_i32_0 = arith.constant 0 : i32
    %c0_i32_1 = arith.constant 0 : i32
    return %arg0, %c0_i32, %c0_i32_0 : i32, i32, i32
  }
}

module attributes {stable_mosaic.version = 11 : i64} {
  func.func @_conv_bn_stats_kernel(%arg0: i32, %arg1: memref<1x8x64xf32, #tpu.memory_space<vmem>>, %arg2: memref<8x1xf32, #tpu.memory_space<vmem>>, %arg3: memref<8x1xf32, #tpu.memory_space<vmem>>, %arg4: memref<72x8xf32, #tpu.memory_space<vmem>>, %arg5: memref<1x8x64xf32, #tpu.memory_space<vmem>>, %arg6: memref<1x2x8xf32, #tpu.memory_space<vmem>>, %arg7: memref<10x10x8xf32, #tpu.memory_space<vmem>>, %arg8: memref<64x72xf32, #tpu.memory_space<vmem>>) attributes {dimension_semantics = [#tpu.dimension_semantics<parallel>], iteration_bounds = array<i64: 2>, scalar_prefetch = 0 : i64, scratch_operands = 2 : i64, tpu.core_type = #tpu.core_type<tc>, window_params = [{transform_indices = @transform_0, window_bounds = array<i64: 1, 8, 64>}, {pipeline_mode = #tpu.pipeline_mode<synchronous>, transform_indices = @transform_1, window_bounds = array<i64: 8, 1>}, {pipeline_mode = #tpu.pipeline_mode<synchronous>, transform_indices = @transform_2, window_bounds = array<i64: 8, 1>}, {pipeline_mode = #tpu.pipeline_mode<synchronous>, transform_indices = @transform_3, window_bounds = array<i64: 72, 8>}, {transform_indices = @transform_4, window_bounds = array<i64: 1, 8, 64>}, {transform_indices = @transform_5, window_bounds = array<i64: 1, 2, 8>}]} {
    %c0 = arith.constant 0 : index
    %c0_0 = arith.constant 0 : index
    %c0_1 = arith.constant 0 : index
    %0 = vector.load %arg1[%c0, %c0_0, %c0_1] : memref<1x8x64xf32, #tpu.memory_space<vmem>>, vector<1x8x64xf32>
    %1 = vector.shape_cast %0 : vector<1x8x64xf32> to vector<8x64xf32>
    %c0_2 = arith.constant 0 : index
    %c0_3 = arith.constant 0 : index
    %2 = vector.load %arg2[%c0_2, %c0_3] : memref<8x1xf32, #tpu.memory_space<vmem>>, vector<8x1xf32>
    %3 = vector.broadcast %2 : vector<8x1xf32> to vector<8x64xf32>
    %4 = arith.mulf %1, %3 : vector<8x64xf32>
    %c0_4 = arith.constant 0 : index
    %c0_5 = arith.constant 0 : index
    %5 = vector.load %arg3[%c0_4, %c0_5] : memref<8x1xf32, #tpu.memory_space<vmem>>, vector<8x1xf32>
    %6 = vector.broadcast %5 : vector<8x1xf32> to vector<8x64xf32>
    %7 = arith.addf %4, %6 : vector<8x64xf32>
    %cst = arith.constant 0.000000e+00 : f32
    %8 = vector.broadcast %cst : f32 to vector<8x64xf32>
    %9 = arith.maximumf %7, %8 : vector<8x64xf32>
    %10 = tpu.transpose %9, [1, 0] : vector<8x64xf32> -> vector<64x8xf32>
    %11 = vector.shape_cast %10 : vector<64x8xf32> to vector<8x8x8xf32>
    %cst_6 = arith.constant 0.000000e+00 : f32
    %12 = vector.broadcast %cst_6 : f32 to vector<10x10x8xf32>
    %c0_7 = arith.constant 0 : index
    %c0_8 = arith.constant 0 : index
    %c0_9 = arith.constant 0 : index
    %13 = vector.load %arg7[%c0_7, %c0_8, %c0_9] : memref<10x10x8xf32, #tpu.memory_space<vmem>>, vector<10x10x8xf32>
    tpu.vector_store %arg7[%c0_7, %c0_8, %c0_9], %12 {strides = array<i32>} : memref<10x10x8xf32, #tpu.memory_space<vmem>>, vector<10x10x8xf32>,
    %c1 = arith.constant 1 : index
    %c1_10 = arith.constant 1 : index
    %c0_11 = arith.constant 0 : index
    %14 = vector.load %arg7[%c1, %c1_10, %c0_11] : memref<10x10x8xf32, #tpu.memory_space<vmem>>, vector<8x8x8xf32>
    tpu.vector_store %arg7[%c1, %c1_10, %c0_11], %11 {strides = array<i32>} : memref<10x10x8xf32, #tpu.memory_space<vmem>>, vector<8x8x8xf32>,
    %c0_12 = arith.constant 0 : index
    %c0_13 = arith.constant 0 : index
    %c0_14 = arith.constant 0 : index
    %15 = vector.load %arg7[%c0_12, %c0_13, %c0_14] : memref<10x10x8xf32, #tpu.memory_space<vmem>>, vector<8x8x8xf32>
    %16 = vector.shape_cast %15 : vector<8x8x8xf32> to vector<64x8xf32>
    %c0_15 = arith.constant 0 : index
    %c0_16 = arith.constant 0 : index
    %17 = vector.load %arg8[%c0_15, %c0_16] : memref<64x72xf32, #tpu.memory_space<vmem>>, vector<64x8xf32>
    tpu.vector_store %arg8[%c0_15, %c0_16], %16 {strides = array<i32>} : memref<64x72xf32, #tpu.memory_space<vmem>>, vector<64x8xf32>,
    %c0_17 = arith.constant 0 : index
    %c1_18 = arith.constant 1 : index
    %c0_19 = arith.constant 0 : index
    %18 = vector.load %arg7[%c0_17, %c1_18, %c0_19] : memref<10x10x8xf32, #tpu.memory_space<vmem>>, vector<8x8x8xf32>
    %19 = vector.shape_cast %18 : vector<8x8x8xf32> to vector<64x8xf32>
    %c0_20 = arith.constant 0 : index
    %c8 = arith.constant 8 : index
    %20 = vector.load %arg8[%c0_20, %c8] : memref<64x72xf32, #tpu.memory_space<vmem>>, vector<64x8xf32>
    tpu.vector_store %arg8[%c0_20, %c8], %19 {strides = array<i32>} : memref<64x72xf32, #tpu.memory_space<vmem>>, vector<64x8xf32>,
    %c0_21 = arith.constant 0 : index
    %c2 = arith.constant 2 : index
    %c0_22 = arith.constant 0 : index
    %21 = vector.load %arg7[%c0_21, %c2, %c0_22] : memref<10x10x8xf32, #tpu.memory_space<vmem>>, vector<8x8x8xf32>
    %22 = vector.shape_cast %21 : vector<8x8x8xf32> to vector<64x8xf32>
    %c0_23 = arith.constant 0 : index
    %c16 = arith.constant 16 : index
    %23 = vector.load %arg8[%c0_23, %c16] : memref<64x72xf32, #tpu.memory_space<vmem>>, vector<64x8xf32>
    tpu.vector_store %arg8[%c0_23, %c16], %22 {strides = array<i32>} : memref<64x72xf32, #tpu.memory_space<vmem>>, vector<64x8xf32>,
    %c1_24 = arith.constant 1 : index
    %c0_25 = arith.constant 0 : index
    %c0_26 = arith.constant 0 : index
    %24 = vector.load %arg7[%c1_24, %c0_25, %c0_26] : memref<10x10x8xf32, #tpu.memory_space<vmem>>, vector<8x8x8xf32>
    %25 = vector.shape_cast %24 : vector<8x8x8xf32> to vector<64x8xf32>
    %c0_27 = arith.constant 0 : index
    %c24 = arith.constant 24 : index
    %26 = vector.load %arg8[%c0_27, %c24] : memref<64x72xf32, #tpu.memory_space<vmem>>, vector<64x8xf32>
    tpu.vector_store %arg8[%c0_27, %c24], %25 {strides = array<i32>} : memref<64x72xf32, #tpu.memory_space<vmem>>, vector<64x8xf32>,
    %c1_28 = arith.constant 1 : index
    %c1_29 = arith.constant 1 : index
    %c0_30 = arith.constant 0 : index
    %27 = vector.load %arg7[%c1_28, %c1_29, %c0_30] : memref<10x10x8xf32, #tpu.memory_space<vmem>>, vector<8x8x8xf32>
    %28 = vector.shape_cast %27 : vector<8x8x8xf32> to vector<64x8xf32>
    %c0_31 = arith.constant 0 : index
    %c32 = arith.constant 32 : index
    %29 = vector.load %arg8[%c0_31, %c32] : memref<64x72xf32, #tpu.memory_space<vmem>>, vector<64x8xf32>
    tpu.vector_store %arg8[%c0_31, %c32], %28 {strides = array<i32>} : memref<64x72xf32, #tpu.memory_space<vmem>>, vector<64x8xf32>,
    %c1_32 = arith.constant 1 : index
    %c2_33 = arith.constant 2 : index
    %c0_34 = arith.constant 0 : index
    %30 = vector.load %arg7[%c1_32, %c2_33, %c0_34] : memref<10x10x8xf32, #tpu.memory_space<vmem>>, vector<8x8x8xf32>
    %31 = vector.shape_cast %30 : vector<8x8x8xf32> to vector<64x8xf32>
    %c0_35 = arith.constant 0 : index
    %c40 = arith.constant 40 : index
    %32 = vector.load %arg8[%c0_35, %c40] : memref<64x72xf32, #tpu.memory_space<vmem>>, vector<64x8xf32>
    tpu.vector_store %arg8[%c0_35, %c40], %31 {strides = array<i32>} : memref<64x72xf32, #tpu.memory_space<vmem>>, vector<64x8xf32>,
    %c2_36 = arith.constant 2 : index
    %c0_37 = arith.constant 0 : index
    %c0_38 = arith.constant 0 : index
    %33 = vector.load %arg7[%c2_36, %c0_37, %c0_38] : memref<10x10x8xf32, #tpu.memory_space<vmem>>, vector<8x8x8xf32>
    %34 = vector.shape_cast %33 : vector<8x8x8xf32> to vector<64x8xf32>
    %c0_39 = arith.constant 0 : index
    %c48 = arith.constant 48 : index
    %35 = vector.load %arg8[%c0_39, %c48] : memref<64x72xf32, #tpu.memory_space<vmem>>, vector<64x8xf32>
    tpu.vector_store %arg8[%c0_39, %c48], %34 {strides = array<i32>} : memref<64x72xf32, #tpu.memory_space<vmem>>, vector<64x8xf32>,
    %c2_40 = arith.constant 2 : index
    %c1_41 = arith.constant 1 : index
    %c0_42 = arith.constant 0 : index
    %36 = vector.load %arg7[%c2_40, %c1_41, %c0_42] : memref<10x10x8xf32, #tpu.memory_space<vmem>>, vector<8x8x8xf32>
    %37 = vector.shape_cast %36 : vector<8x8x8xf32> to vector<64x8xf32>
    %c0_43 = arith.constant 0 : index
    %c56 = arith.constant 56 : index
    %38 = vector.load %arg8[%c0_43, %c56] : memref<64x72xf32, #tpu.memory_space<vmem>>, vector<64x8xf32>
    tpu.vector_store %arg8[%c0_43, %c56], %37 {strides = array<i32>} : memref<64x72xf32, #tpu.memory_space<vmem>>, vector<64x8xf32>,
    %c2_44 = arith.constant 2 : index
    %c2_45 = arith.constant 2 : index
    %c0_46 = arith.constant 0 : index
    %39 = vector.load %arg7[%c2_44, %c2_45, %c0_46] : memref<10x10x8xf32, #tpu.memory_space<vmem>>, vector<8x8x8xf32>
    %40 = vector.shape_cast %39 : vector<8x8x8xf32> to vector<64x8xf32>
    %c0_47 = arith.constant 0 : index
    %c64 = arith.constant 64 : index
    %41 = vector.load %arg8[%c0_47, %c64] : memref<64x72xf32, #tpu.memory_space<vmem>>, vector<64x8xf32>
    tpu.vector_store %arg8[%c0_47, %c64], %40 {strides = array<i32>} : memref<64x72xf32, #tpu.memory_space<vmem>>, vector<64x8xf32>,
    %c0_48 = arith.constant 0 : index
    %c0_49 = arith.constant 0 : index
    %42 = vector.load %arg8[%c0_48, %c0_49] : memref<64x72xf32, #tpu.memory_space<vmem>>, vector<64x72xf32>
    %c0_50 = arith.constant 0 : index
    %c0_51 = arith.constant 0 : index
    %43 = vector.load %arg4[%c0_50, %c0_51] : memref<72x8xf32, #tpu.memory_space<vmem>>, vector<72x8xf32>
    %cst_52 = arith.constant dense<0.000000e+00> : vector<64x8xf32>
    %44 = tpu.matmul %42, %43, %cst_52 {dimension_numbers = #tpu.dot_dimension_numbers<[1], [0], [0], [1], [0, 0, 1, 1], [], []>} : vector<64x72xf32>, vector<72x8xf32>, vector<64x8xf32> -> vector<64x8xf32>
    %cst_53 = arith.constant dense<0.000000e+00> : vector<8xf32>
    %45 = vector.multi_reduction <add>, %44, %cst_53 [0] : vector<64x8xf32> to vector<8xf32>
    %46 = vector.shape_cast %45 : vector<8xf32> to vector<1x8xf32>
    %c0_54 = arith.constant 0 : index
    %c0_55 = arith.constant 0 : index
    %c0_56 = arith.constant 0 : index
    %47 = vector.load %arg6[%c0_54, %c0_55, %c0_56] : memref<1x2x8xf32, #tpu.memory_space<vmem>>, vector<1x1x8xf32>
    %48 = vector.shape_cast %47 : vector<1x1x8xf32> to vector<1x8xf32>
    %49 = vector.shape_cast %46 : vector<1x8xf32> to vector<1x1x8xf32>
    tpu.vector_store %arg6[%c0_54, %c0_55, %c0_56], %49 {strides = array<i32>} : memref<1x2x8xf32, #tpu.memory_space<vmem>>, vector<1x1x8xf32>,
    %50 = arith.mulf %44, %44 : vector<64x8xf32>
    %cst_57 = arith.constant dense<0.000000e+00> : vector<8xf32>
    %51 = vector.multi_reduction <add>, %50, %cst_57 [0] : vector<64x8xf32> to vector<8xf32>
    %52 = vector.shape_cast %51 : vector<8xf32> to vector<1x8xf32>
    %c0_58 = arith.constant 0 : index
    %c1_59 = arith.constant 1 : index
    %c0_60 = arith.constant 0 : index
    %53 = vector.load %arg6[%c0_58, %c1_59, %c0_60] : memref<1x2x8xf32, #tpu.memory_space<vmem>>, vector<1x1x8xf32>
    %54 = vector.shape_cast %53 : vector<1x1x8xf32> to vector<1x8xf32>
    %55 = vector.shape_cast %52 : vector<1x8xf32> to vector<1x1x8xf32>
    tpu.vector_store %arg6[%c0_58, %c1_59, %c0_60], %55 {strides = array<i32>} : memref<1x2x8xf32, #tpu.memory_space<vmem>>, vector<1x1x8xf32>,
    %56 = tpu.transpose %44, [1, 0] : vector<64x8xf32> -> vector<8x64xf32>
    %c0_61 = arith.constant 0 : index
    %c0_62 = arith.constant 0 : index
    %c0_63 = arith.constant 0 : index
    %57 = vector.load %arg5[%c0_61, %c0_62, %c0_63] : memref<1x8x64xf32, #tpu.memory_space<vmem>>, vector<1x8x64xf32>
    %58 = vector.shape_cast %57 : vector<1x8x64xf32> to vector<8x64xf32>
    %59 = vector.shape_cast %56 : vector<8x64xf32> to vector<1x8x64xf32>
    tpu.vector_store %arg5[%c0_61, %c0_62, %c0_63], %59 {strides = array<i32>} : memref<1x8x64xf32, #tpu.memory_space<vmem>>, vector<1x8x64xf32>,
    return
  }
  func.func @transform_0(%arg0: i32) -> (i32, i32, i32) {
    %c0_i32 = arith.constant 0 : i32
    %c0_i32_0 = arith.constant 0 : i32
    %c0_i32_1 = arith.constant 0 : i32
    return %arg0, %c0_i32, %c0_i32_0 : i32, i32, i32
  }
  func.func @transform_1(%arg0: i32) -> (i32, i32) {
    %c0_i32 = arith.constant 0 : i32
    %c0_i32_0 = arith.constant 0 : i32
    %c0_i32_1 = arith.constant 0 : i32
    return %c0_i32, %c0_i32_0 : i32, i32
  }
  func.func @transform_2(%arg0: i32) -> (i32, i32) {
    %c0_i32 = arith.constant 0 : i32
    %c0_i32_0 = arith.constant 0 : i32
    %c0_i32_1 = arith.constant 0 : i32
    return %c0_i32, %c0_i32_0 : i32, i32
  }
  func.func @transform_3(%arg0: i32) -> (i32, i32) {
    %c0_i32 = arith.constant 0 : i32
    %c0_i32_0 = arith.constant 0 : i32
    %c0_i32_1 = arith.constant 0 : i32
    return %c0_i32, %c0_i32_0 : i32, i32
  }
  func.func @transform_4(%arg0: i32) -> (i32, i32, i32) {
    %c0_i32 = arith.constant 0 : i32
    %c0_i32_0 = arith.constant 0 : i32
    %c0_i32_1 = arith.constant 0 : i32
    return %arg0, %c0_i32, %c0_i32_0 : i32, i32, i32
  }
  func.func @transform_5(%arg0: i32) -> (i32, i32, i32) {
    %c0_i32 = arith.constant 0 : i32
    %c0_i32_0 = arith.constant 0 : i32
    %c0_i32_1 = arith.constant 0 : i32
    return %arg0, %c0_i32, %c0_i32_0 : i32, i32, i32
  }
}

</mosaic_0001>

<llo_original>
// kernel: double_conv2_forward.5
$region0: #{double_conv2_forward.5}
  #allocation0 [shape = 'u32[]', space=smem, size = 0x4, offset = 0x4, fixed_abs, tag = 'smem constant byte address 0x4 - core index']
  #allocation1 [shape = 'u32[144,128]{1,0:T(1,128)}', space=vmem, size = 0x12000, scoped, tag = 'internal scratch']
  %s0 = inlined_call_operand.vmem [shape: f32[2,8,64], index: 0, kind: input, shape index: {}]
  %s1 = inlined_call_operand.vmem [shape: f32[8,1], index: 1, kind: input, shape index: {}]
  %s2 = inlined_call_operand.vmem [shape: f32[8,1], index: 2, kind: input, shape index: {}]
  %s3 = inlined_call_operand.vmem [shape: f32[2,8,64], index: 3, kind: output, shape index: {}]
  %s4 = sld [smem:[#allocation0]]
  $region45: #{double_conv2_forward.5} parent=0
    _
  %s6 = ssub.s32 1, %s4
  %s7 = scalar_select 0, %s6, %s4
  loop: start=0, step=1, limit=4
  $region2: #{double_conv2_forward.5} parent=0 // loop_pre_header
    _
  $region3: #{double_conv2_forward.5} parent=0 // loop_header
    %s9 = sphi 0, %s13
    %p10 = scmp.ge.s32.totalorder %s9, 4
    %s19 = sphi 0, %s21
    %s22 = sphi 0, %s19
    %s23 = sphi 0, %s22
    %s39 = sphi 0, %s23
    %s43 = sphi 0, %s43
    %s45 = sphi 0, %s43
    %s46 = sphi 0, %s45
    %s60 = sphi 0, %s46
    %s64 = sphi 0, %s64
    %s66 = sphi 0, %s64
    %s67 = sphi 0, %s66
    %s81 = sphi 0, %s67
    %s87 = sphi 0, %s89
    %s90 = sphi 0, %s87
    %s91 = sphi 0, %s90
    %s107 = sphi 0, %s91
  $region4: #{double_conv2_forward.5} parent=0 // loop_header_branch
    %12 = sbr.rel (%p10) target = $region8
  $region5: #{double_conv2_forward.5} parent=0 // loop_body
    %s14 = ssub.s32 %s9, 1
    %s15 = ssub.s32 %s9, 2
    %s16 = sadd.s32 %s9, 1
    %s17 = ssub.s32 %s9, %s16
    %p18 = scmp.eq.s32.totalorder %s17, 0
    %s20 = sadd.s32 %s19, 1
    %s21 = scalar_select %p18, %s19, %s20
    %p24 = pneg %p18
    %p25 = scmp.eq.s32.totalorder %s9, 1
    %p26 = por %p24, %p25
    %p27 = scmp.ne.s32.totalorder %s19, %s22
    %p28 = scmp.eq.s32.totalorder %s9, 0
    %p29 = por %p27, %p28
    %p30 = scmp.ne.s32.totalorder %s19, %s22
    %p31 = scmp.eq.s32.totalorder %s14, 1
    %p32 = por %p30, %p31
    %p33 = scmp.ne.s32.totalorder %s22, %s23
    %p34 = scmp.eq.s32.totalorder %s14, 0
    %p35 = por %p33, %p34
    %p36 = scmp.ne.s32.totalorder %s22, %s23
    %p37 = scmp.eq.s32.totalorder %s15, 1
    %p38 = por %p36, %p37
    %p40 = scmp.ne.s32.totalorder %s23, %s39
    %p41 = scmp.eq.s32.totalorder %s15, 0
    %p42 = por %p40, %p41
    %s44 = sadd.s32 %s43, 1
    %p47 = scmp.eq.s32.totalorder %s9, 1
    %p48 = scmp.ne.s32.totalorder %s43, %s45
    %p49 = scmp.eq.s32.totalorder %s9, 0
    %p50 = por %p48, %p49
    %p51 = scmp.ne.s32.totalorder %s43, %s45
    %p52 = scmp.eq.s32.totalorder %s14, 1
    %p53 = por %p51, %p52
    %p54 = scmp.ne.s32.totalorder %s45, %s46
    %p55 = scmp.eq.s32.totalorder %s14, 0
    %p56 = por %p54, %p55
    %p57 = scmp.ne.s32.totalorder %s45, %s46
    %p58 = scmp.eq.s32.totalorder %s15, 1
    %p59 = por %p57, %p58
    %p61 = scmp.ne.s32.totalorder %s46, %s60
    %p62 = scmp.eq.s32.totalorder %s15, 0
    %p63 = por %p61, %p62
    %s65 = sadd.s32 %s64, 1
    %p68 = scmp.eq.s32.totalorder %s9, 1
    %p69 = scmp.ne.s32.totalorder %s64, %s66
    %p70 = scmp.eq.s32.totalorder %s9, 0
    %p71 = por %p69, %p70
    %p72 = scmp.ne.s32.totalorder %s64, %s66
    %p73 = scmp.eq.s32.totalorder %s14, 1
    %p74 = por %p72, %p73
    %p75 = scmp.ne.s32.totalorder %s66, %s67
    %p76 = scmp.eq.s32.totalorder %s14, 0
    %p77 = por %p75, %p76
    %p78 = scmp.ne.s32.totalorder %s66, %s67
    %p79 = scmp.eq.s32.totalorder %s15, 1
    %p80 = por %p78, %p79
    %p82 = scmp.ne.s32.totalorder %s67, %s81
    %p83 = scmp.eq.s32.totalorder %s15, 0
    %p84 = por %p82, %p83
    %s85 = ssub.s32 %s9, %s16
    %p86 = scmp.eq.s32.totalorder %s85, 0
    %s88 = sadd.s32 %s87, 1
    %s89 = scalar_select %p86, %s87, %s88
    %p92 = pneg %p86
    %p93 = scmp.eq.s32.totalorder %s9, 1
    %p94 = por %p92, %p93
    %p95 = scmp.ne.s32.totalorder %s87, %s90
    %p96 = scmp.eq.s32.totalorder %s9, 0
    %p97 = por %p95, %p96
    %p98 = scmp.ne.s32.totalorder %s87, %s90
    %p99 = scmp.eq.s32.totalorder %s14, 1
    %p100 = por %p98, %p99
    %p101 = scmp.ne.s32.totalorder %s90, %s91
    %p102 = scmp.eq.s32.totalorder %s14, 0
    %p103 = por %p101, %p102
    %p104 = scmp.ne.s32.totalorder %s90, %s91
    %p105 = scmp.eq.s32.totalorder %s15, 1
    %p106 = por %p104, %p105
    %p108 = scmp.ne.s32.totalorder %s91, %s107
    %p109 = scmp.eq.s32.totalorder %s15, 0
    %p110 = por %p108, %p109
    %p111 = scmp.le.s32.totalorder 1, %s9
    %p112 = scmp.lt.s32.totalorder %s9, 3
    %p113 = pnand %p111, %p112
    %p114 = pneg %p113
    // Predicated region
    $region9: #{double_conv2_forward.5} parent=5 // pred_check
      _
    $region10: #{double_conv2_forward.5} parent=5 // pred_check_branch
      %116 = sbr.rel (%p113) target = $region12
    $region11: #{double_conv2_forward.5} parent=5 // pred_region
      %s117 = ssub.s32 %s9, 1
      // Predicated region
      $region13: #{double_conv2_forward.5} parent=11 // pred_check
        %p118 = pneg %p56
      $region14: #{double_conv2_forward.5} parent=11 // pred_check_branch
        %120 = sbr.rel (%p118) target = $region16
      $region15: #{double_conv2_forward.5} parent=11 // pred_region
        _
      $region16: #{double_conv2_forward.5} parent=11 // pred_fallthru
        _
      // Predicated region
      $region17: #{double_conv2_forward.5} parent=11 // pred_check
        %p121 = pneg %p77
      $region18: #{double_conv2_forward.5} parent=11 // pred_check_branch
        %123 = sbr.rel (%p121) target = $region20
      $region19: #{double_conv2_forward.5} parent=11 // pred_region
        _
      $region20: #{double_conv2_forward.5} parent=11 // pred_fallthru
        _
    $region12: #{double_conv2_forward.5} parent=5 // pred_fallthru
      _
    %p124 = scmp.lt.s32.totalorder %s9, 2
    // Predicated region
    $region21: #{double_conv2_forward.5} parent=5 // pred_check
      %p125 = pneg %p124
    $region22: #{double_conv2_forward.5} parent=5 // pred_check_branch
      %127 = sbr.rel (%p125) target = $region24
    $region23: #{double_conv2_forward.5} parent=5 // pred_region
      // Predicated region
      $region25: #{double_conv2_forward.5} parent=23 // pred_check
        %p128 = pneg %p29
      $region26: #{double_conv2_forward.5} parent=23 // pred_check_branch
        %130 = sbr.rel (%p128) target = $region28
      $region27: #{double_conv2_forward.5} parent=23 // pred_region
        %p131 = scmp.lt.s32.totalorder %s9, 1
        %s132 = scalar_select %p131, %s9, 1
        %s133 = smul.addr %s132, 8
        %s134 = scalar_lea.vmem %s0, %s133
      $region28: #{double_conv2_forward.5} parent=23 // pred_fallthru
        _
    $region24: #{double_conv2_forward.5} parent=5 // pred_fallthru
      _
    %p135 = scmp.le.s32.totalorder 1, %s9
    %p136 = scmp.lt.s32.totalorder %s9, 3
    %p137 = pnand %p135, %p136
    %p138 = pneg %p137
    // Predicated region
    $region29: #{double_conv2_forward.5} parent=5 // pred_check
      _
    $region30: #{double_conv2_forward.5} parent=5 // pred_check_branch
      %140 = sbr.rel (%p137) target = $region32
    $region31: #{double_conv2_forward.5} parent=5 // pred_region
      %s141 = ssub.s32 %s9, 1
      %p142 = scmp.lt.s32.totalorder %s14, 1
      %s143 = scalar_select %p142, %s14, 1
      %s144 = smul.addr %s143, 8
      %s145 = scalar_lea.vmem %s0, %s144
      %p146 = pneg %p35
      %p147 = pneg %p32
      %p148 = pneg %p56
      %p149 = pneg %p53
      %p150 = pneg %p77
      %p151 = pneg %p74
      %p152 = pneg %p103
      %p153 = pneg %p100
      %p154 = scmp.lt.s32.totalorder %s14, 1
      %s155 = scalar_select %p154, %s14, 1
      %s156 = smul.addr %s155, 8
      %s157 = scalar_lea.vmem %s3, %s156
      %p158 = scmp.lt.s32.totalorder %s14, 1
      %s159 = scalar_select %p158, %s14, 1
      %s160 = smul.addr %s159, 8
      %s161 = scalar_lea.vmem %s0, %s160
      %p162 = scmp.lt.s32.totalorder %s14, 1
      %s163 = scalar_select %p162, %s14, 1
      %s164 = smul.addr %s163, 8
      %s165 = scalar_lea.vmem %s3, %s164
      %v166 = vld [vmem:[%s161] sm:$0xff]
      %v167 = vld [vmem:[%s1] sm:$0xff]
      %169 = vset.pattern.permute.xlu0 0
      %170 = vperm.xlu0 %169, %v167
      %v171 = vpop.permute.xlu0 %170
      %v173 = vmul.f32 %v166, %v171
      %v174 = vld [vmem:[%s2] sm:$0xff]
      %176 = vset.pattern.permute.xlu0 0
      %177 = vperm.xlu0 %176, %v174
      %v178 = vpop.permute.xlu0 %177
      %v180 = vadd.f32 %v173, %v178
      %v181 = vmax.f32 %v180, 0.0
      %vm182 = vcmask 523264
      %183 = vst.msk [vmem:[%s165] sm:$0xff] %vm182, %v181
      %p184 = scmp.lt.s32.totalorder %s14, 1
      %s185 = scalar_select %p184, %s14, 1
      %s186 = smul.addr %s185, 8
      %s187 = scalar_lea.vmem %s3, %s186
      // Predicated region
      $region33: #{double_conv2_forward.5} parent=31 // pred_check
        %p188 = pneg %p100
      $region34: #{double_conv2_forward.5} parent=31 // pred_check_branch
        %190 = sbr.rel (%p188) target = $region36
      $region35: #{double_conv2_forward.5} parent=31 // pred_region
        _
      $region36: #{double_conv2_forward.5} parent=31 // pred_fallthru
        _
    $region32: #{double_conv2_forward.5} parent=5 // pred_fallthru
      _
    %p191 = scmp.le.s32.totalorder 2, %s9
    // Predicated region
    $region37: #{double_conv2_forward.5} parent=5 // pred_check
      %p192 = pneg %p191
    $region38: #{double_conv2_forward.5} parent=5 // pred_check_branch
      %194 = sbr.rel (%p192) target = $region40
    $region39: #{double_conv2_forward.5} parent=5 // pred_region
      %s195 = ssub.s32 %s9, 2
      // Predicated region
      $region41: #{double_conv2_forward.5} parent=39 // pred_check
        %p196 = pneg %p106
      $region42: #{double_conv2_forward.5} parent=39 // pred_check_branch
        %198 = sbr.rel (%p196) target = $region44
      $region43: #{double_conv2_forward.5} parent=39 // pred_region
        %p199 = scmp.lt.s32.totalorder %s15, 1
        %s200 = scalar_select %p199, %s15, 1
        %s201 = smul.addr %s200, 8
        %s202 = scalar_lea.vmem %s3, %s201
      $region44: #{double_conv2_forward.5} parent=39 // pred_fallthru
        _
    $region40: #{double_conv2_forward.5} parent=5 // pred_fallthru
      _
  $region6: #{double_conv2_forward.5} parent=0 // loop_footer
    %s13 = sadd.s32 1, %s9
  $region7: #{double_conv2_forward.5} parent=0 // loop_footer_branch
    %8 = sbr.rel target = $region3
  $region8: #{double_conv2_forward.5} parent=0 // loop_exit
    _

// kernel: double_conv2_forward.3
$region0: #{double_conv2_forward.3}
  #allocation0 [shape = 'u32[]', space=smem, size = 0x4, offset = 0x4, fixed_abs, tag = 'smem constant byte address 0x4 - core index']
  #allocation1 [shape = 'u32[144,128]{1,0:T(1,128)}', space=vmem, size = 0x12000, scoped, tag = 'internal scratch']
  #allocation2 [shape = 'f32[18,18,4]{2,1,0:T(8,128)}', space=vmem, size = 0x36000, scoped, tag = 'scratch operand']
  #allocation3 [shape = 'f32[64,36]{1,0:T(8,128)}', space=vmem, size = 0x8000, scoped, tag = 'scratch operand']
  %s0 = inlined_call_operand.vmem [shape: f32[2,4,256], index: 0, kind: input, shape index: {}]
  %s1 = inlined_call_operand.vmem [shape: f32[4,1], index: 1, kind: input, shape index: {}]
  %s2 = inlined_call_operand.vmem [shape: f32[4,1], index: 2, kind: input, shape index: {}]
  %s3 = inlined_call_operand.vmem [shape: f32[36,8], index: 3, kind: input, shape index: {}]
  %s4 = inlined_call_operand.vmem [shape: f32[2,8,64], index: 4, kind: output, shape index: {0}]
  %s5 = inlined_call_operand.vmem [shape: f32[2,2,8], index: 5, kind: output, shape index: {1}]
  %6 = xla_tuple %s4, %s5
  %s7 = sld [smem:[#allocation0]]
  $region57: #{double_conv2_forward.3} parent=0
    _
  %s9 = ssub.s32 1, %s7
  %s10 = scalar_select 0, %s9, %s7
  loop: start=0, step=1, limit=4
  $region2: #{double_conv2_forward.3} parent=0 // loop_pre_header
    _
  $region3: #{double_conv2_forward.3} parent=0 // loop_header
    %s12 = sphi 0, %s16
    %p13 = scmp.ge.s32.totalorder %s12, 4
    %s22 = sphi 0, %s24
    %s25 = sphi 0, %s22
    %s26 = sphi 0, %s25
    %s42 = sphi 0, %s26
    %s46 = sphi 0, %s46
    %s48 = sphi 0, %s46
    %s49 = sphi 0, %s48
    %s63 = sphi 0, %s49
    %s67 = sphi 0, %s67
    %s69 = sphi 0, %s67
    %s70 = sphi 0, %s69
    %s84 = sphi 0, %s70
    %s88 = sphi 0, %s88
    %s90 = sphi 0, %s88
    %s91 = sphi 0, %s90
    %s105 = sphi 0, %s91
    %s111 = sphi 0, %s113
    %s114 = sphi 0, %s111
    %s115 = sphi 0, %s114
    %s131 = sphi 0, %s115
    %s137 = sphi 0, %s139
    %s140 = sphi 0, %s137
    %s141 = sphi 0, %s140
    %s157 = sphi 0, %s141
  $region4: #{double_conv2_forward.3} parent=0 // loop_header_branch
    %15 = sbr.rel (%p13) target = $region8
  $region5: #{double_conv2_forward.3} parent=0 // loop_body
    %s17 = ssub.s32 %s12, 1
    %s18 = ssub.s32 %s12, 2
    %s19 = sadd.s32 %s12, 1
    %s20 = ssub.s32 %s12, %s19
    %p21 = scmp.eq.s32.totalorder %s20, 0
    %s23 = sadd.s32 %s22, 1
    %s24 = scalar_select %p21, %s22, %s23
    %p27 = pneg %p21
    %p28 = scmp.eq.s32.totalorder %s12, 1
    %p29 = por %p27, %p28
    %p30 = scmp.ne.s32.totalorder %s22, %s25
    %p31 = scmp.eq.s32.totalorder %s12, 0
    %p32 = por %p30, %p31
    %p33 = scmp.ne.s32.totalorder %s22, %s25
    %p34 = scmp.eq.s32.totalorder %s17, 1
    %p35 = por %p33, %p34
    %p36 = scmp.ne.s32.totalorder %s25, %s26
    %p37 = scmp.eq.s32.totalorder %s17, 0
    %p38 = por %p36, %p37
    %p39 = scmp.ne.s32.totalorder %s25, %s26
    %p40 = scmp.eq.s32.totalorder %s18, 1
    %p41 = por %p39, %p40
    %p43 = scmp.ne.s32.totalorder %s26, %s42
    %p44 = scmp.eq.s32.totalorder %s18, 0
    %p45 = por %p43, %p44
    %s47 = sadd.s32 %s46, 1
    %p50 = scmp.eq.s32.totalorder %s12, 1
    %p51 = scmp.ne.s32.totalorder %s46, %s48
    %p52 = scmp.eq.s32.totalorder %s12, 0
    %p53 = por %p51, %p52
    %p54 = scmp.ne.s32.totalorder %s46, %s48
    %p55 = scmp.eq.s32.totalorder %s17, 1
    %p56 = por %p54, %p55
    %p57 = scmp.ne.s32.totalorder %s48, %s49
    %p58 = scmp.eq.s32.totalorder %s17, 0
    %p59 = por %p57, %p58
    %p60 = scmp.ne.s32.totalorder %s48, %s49
    %p61 = scmp.eq.s32.totalorder %s18, 1
    %p62 = por %p60, %p61
    %p64 = scmp.ne.s32.totalorder %s49, %s63
    %p65 = scmp.eq.s32.totalorder %s18, 0
    %p66 = por %p64, %p65
    %s68 = sadd.s32 %s67, 1
    %p71 = scmp.eq.s32.totalorder %s12, 1
    %p72 = scmp.ne.s32.totalorder %s67, %s69
    %p73 = scmp.eq.s32.totalorder %s12, 0
    %p74 = por %p72, %p73
    %p75 = scmp.ne.s32.totalorder %s67, %s69
    %p76 = scmp.eq.s32.totalorder %s17, 1
    %p77 = por %p75, %p76
    %p78 = scmp.ne.s32.totalorder %s69, %s70
    %p79 = scmp.eq.s32.totalorder %s17, 0
    %p80 = por %p78, %p79
    %p81 = scmp.ne.s32.totalorder %s69, %s70
    %p82 = scmp.eq.s32.totalorder %s18, 1
    %p83 = por %p81, %p82
    %p85 = scmp.ne.s32.totalorder %s70, %s84
    %p86 = scmp.eq.s32.totalorder %s18, 0
    %p87 = por %p85, %p86
    %s89 = sadd.s32 %s88, 1
    %p92 = scmp.eq.s32.totalorder %s12, 1
    %p93 = scmp.ne.s32.totalorder %s88, %s90
    %p94 = scmp.eq.s32.totalorder %s12, 0
    %p95 = por %p93, %p94
    %p96 = scmp.ne.s32.totalorder %s88, %s90
    %p97 = scmp.eq.s32.totalorder %s17, 1
    %p98 = por %p96, %p97
    %p99 = scmp.ne.s32.totalorder %s90, %s91
    %p100 = scmp.eq.s32.totalorder %s17, 0
    %p101 = por %p99, %p100
    %p102 = scmp.ne.s32.totalorder %s90, %s91
    %p103 = scmp.eq.s32.totalorder %s18, 1
    %p104 = por %p102, %p103
    %p106 = scmp.ne.s32.totalorder %s91, %s105
    %p107 = scmp.eq.s32.totalorder %s18, 0
    %p108 = por %p106, %p107
    %s109 = ssub.s32 %s12, %s19
    %p110 = scmp.eq.s32.totalorder %s109, 0
    %s112 = sadd.s32 %s111, 1
    %s113 = scalar_select %p110, %s111, %s112
    %p116 = pneg %p110
    %p117 = scmp.eq.s32.totalorder %s12, 1
    %p118 = por %p116, %p117
    %p119 = scmp.ne.s32.totalorder %s111, %s114
    %p120 = scmp.eq.s32.totalorder %s12, 0
    %p121 = por %p119, %p120
    %p122 = scmp.ne.s32.totalorder %s111, %s114
    %p123 = scmp.eq.s32.totalorder %s17, 1
    %p124 = por %p122, %p123
    %p125 = scmp.ne.s32.totalorder %s114, %s115
    %p126 = scmp.eq.s32.totalorder %s17, 0
    %p127 = por %p125, %p126
    %p128 = scmp.ne.s32.totalorder %s114, %s115
    %p129 = scmp.eq.s32.totalorder %s18, 1
    %p130 = por %p128, %p129
    %p132 = scmp.ne.s32.totalorder %s115, %s131
    %p133 = scmp.eq.s32.totalorder %s18, 0
    %p134 = por %p132, %p133
    %s135 = ssub.s32 %s12, %s19
    %p136 = scmp.eq.s32.totalorder %s135, 0
    %s138 = sadd.s32 %s137, 1
    %s139 = scalar_select %p136, %s137, %s138
    %p142 = pneg %p136
    %p143 = scmp.eq.s32.totalorder %s12, 1
    %p144 = por %p142, %p143
    %p145 = scmp.ne.s32.totalorder %s137, %s140
    %p146 = scmp.eq.s32.totalorder %s12, 0
    %p147 = por %p145, %p146
    %p148 = scmp.ne.s32.totalorder %s137, %s140
    %p149 = scmp.eq.s32.totalorder %s17, 1
    %p150 = por %p148, %p149
    %p151 = scmp.ne.s32.totalorder %s140, %s141
    %p152 = scmp.eq.s32.totalorder %s17, 0
    %p153 = por %p151, %p152
    %p154 = scmp.ne.s32.totalorder %s140, %s141
    %p155 = scmp.eq.s32.totalorder %s18, 1
    %p156 = por %p154, %p155
    %p158 = scmp.ne.s32.totalorder %s141, %s157
    %p159 = scmp.eq.s32.totalorder %s18, 0
    %p160 = por %p158, %p159
    %p161 = scmp.le.s32.totalorder 1, %s12
    %p162 = scmp.lt.s32.totalorder %s12, 3
    %p163 = pnand %p161, %p162
    %p164 = pneg %p163
    // Predicated region
    $region9: #{double_conv2_forward.3} parent=5 // pred_check
      _
    $region10: #{double_conv2_forward.3} parent=5 // pred_check_branch
      %166 = sbr.rel (%p163) target = $region12
    $region11: #{double_conv2_forward.3} parent=5 // pred_region
      %s167 = ssub.s32 %s12, 1
      // Predicated region
      $region13: #{double_conv2_forward.3} parent=11 // pred_check
        %p168 = pneg %p59
      $region14: #{double_conv2_forward.3} parent=11 // pred_check_branch
        %170 = sbr.rel (%p168) target = $region16
      $region15: #{double_conv2_forward.3} parent=11 // pred_region
        _
      $region16: #{double_conv2_forward.3} parent=11 // pred_fallthru
        _
      // Predicated region
      $region17: #{double_conv2_forward.3} parent=11 // pred_check
        %p171 = pneg %p80
      $region18: #{double_conv2_forward.3} parent=11 // pred_check_branch
        %173 = sbr.rel (%p171) target = $region20
      $region19: #{double_conv2_forward.3} parent=11 // pred_region
        _
      $region20: #{double_conv2_forward.3} parent=11 // pred_fallthru
        _
      // Predicated region
      $region21: #{double_conv2_forward.3} parent=11 // pred_check
        %p174 = pneg %p101
      $region22: #{double_conv2_forward.3} parent=11 // pred_check_branch
        %176 = sbr.rel (%p174) target = $region24
      $region23: #{double_conv2_forward.3} parent=11 // pred_region
        _
      $region24: #{double_conv2_forward.3} parent=11 // pred_fallthru
        _
    $region12: #{double_conv2_forward.3} parent=5 // pred_fallthru
      _
    %p177 = scmp.lt.s32.totalorder %s12, 2
    // Predicated region
    $region25: #{double_conv2_forward.3} parent=5 // pred_check
      %p178 = pneg %p177
    $region26: #{double_conv2_forward.3} parent=5 // pred_check_branch
      %180 = sbr.rel (%p178) target = $region28
    $region27: #{double_conv2_forward.3} parent=5 // pred_region
      // Predicated region
      $region29: #{double_conv2_forward.3} parent=27 // pred_check
        %p181 = pneg %p32
      $region30: #{double_conv2_forward.3} parent=27 // pred_check_branch
        %183 = sbr.rel (%p181) target = $region32
      $region31: #{double_conv2_forward.3} parent=27 // pred_region
        %p184 = scmp.lt.s32.totalorder %s12, 1
        %s185 = scalar_select %p184, %s12, 1
        %s186 = smul.addr %s185, 2
        %s187 = smul.addr %s186, 4
        %s188 = scalar_lea.vmem %s0, %s187
      $region32: #{double_conv2_forward.3} parent=27 // pred_fallthru
        _
    $region28: #{double_conv2_forward.3} parent=5 // pred_fallthru
      _
    %p189 = scmp.le.s32.totalorder 1, %s12
    %p190 = scmp.lt.s32.totalorder %s12, 3
    %p191 = pnand %p189, %p190
    %p192 = pneg %p191
    // Predicated region
    $region33: #{double_conv2_forward.3} parent=5 // pred_check
      _
    $region34: #{double_conv2_forward.3} parent=5 // pred_check_branch
      %194 = sbr.rel (%p191) target = $region36
    $region35: #{double_conv2_forward.3} parent=5 // pred_region
      %s195 = ssub.s32 %s12, 1
      %p196 = scmp.lt.s32.totalorder %s17, 1
      %s197 = scalar_select %p196, %s17, 1
      %s198 = smul.addr %s197, 2
      %s199 = smul.addr %s198, 4
      %s200 = scalar_lea.vmem %s0, %s199
      %p201 = pneg %p38
      %p202 = pneg %p35
      %p203 = pneg %p59
      %p204 = pneg %p56
      %p205 = pneg %p80
      %p206 = pneg %p77
      %p207 = pneg %p101
      %p208 = pneg %p98
      %p209 = pneg %p127
      %p210 = pneg %p124
      %p211 = scmp.lt.s32.totalorder %s17, 1
      %s212 = scalar_select %p211, %s17, 1
      %s213 = smul.addr %s212, 8
      %s214 = scalar_lea.vmem %s4, %s213
      %p215 = pneg %p153
      %p216 = pneg %p150
      %p217 = scmp.lt.s32.totalorder %s17, 1
      %s218 = scalar_select %p217, %s17, 1
      %s219 = smul.addr %s218, 2
      %s220 = scalar_lea.vmem %s5, %s219
      %p221 = scmp.lt.s32.totalorder %s17, 1
      %s222 = scalar_select %p221, %s17, 1
      %s223 = smul.addr %s222, 2
      %s224 = smul.addr %s223, 4
      %s225 = scalar_lea.vmem %s0, %s224
      %p226 = scmp.lt.s32.totalorder %s17, 1
      %s227 = scalar_select %p226, %s17, 1
      %s228 = smul.addr %s227, 8
      %s229 = scalar_lea.vmem %s4, %s228
      %p230 = scmp.lt.s32.totalorder %s17, 1
      %s231 = scalar_select %p230, %s17, 1
      %s232 = smul.addr %s231, 2
      %s233 = scalar_lea.vmem %s5, %s232
      %v234 = vld [vmem:[%s225] sm:$0xff]
      %v235 = vld [vmem:[%s1] sm:$0xf]
      %237 = vset.pattern.permute.xlu0 0
      %238 = vperm.xlu0 %237, %v235
      %v239 = vpop.permute.xlu0 %238
      %v241 = vunpack.c.l.s4 839922192
      %v242 = vunpack.c.0.s8 %v241
      %v243 = vlaneseq
      %v244 = vshrl.u32 %v243, 7
      %v245 = vsub.s32 %v242, %v244
      %v246 = vrot.slane %v239, %v245
      %v248 = vmul.f32 %v234, %v246
      %v249 = vld [vmem:[%s2] sm:$0xf]
      %251 = vset.pattern.permute.xlu0 0
      %252 = vperm.xlu0 %251, %v249
      %v253 = vpop.permute.xlu0 %252
      %v255 = vunpack.c.l.s4 839922192
      %v256 = vunpack.c.0.s8 %v255
      %v257 = vlaneseq
      %v258 = vshrl.u32 %v257, 7
      %v259 = vsub.s32 %v256, %v258
      %v260 = vrot.slane %v253, %v259
      %v262 = vadd.f32 %v248, %v260
      %v264 = vcombine.high %v262, %v262
      %266 = vxpose.xlu0.b32.start [1/16] %v262, 128
      %267 = vxpose.xlu0.b32.cont [2/16] 0.0, 128
      %268 = vxpose.xlu0.b32.cont [3/16] 0.0, 128
      %269 = vxpose.xlu0.b32.cont [4/16] 0.0, 128
      %270 = vxpose.xlu0.b32.cont [5/16] 0.0, 128
      %271 = vxpose.xlu0.b32.cont [6/16] 0.0, 128
      %272 = vxpose.xlu0.b32.cont [7/16] 0.0, 128
      %273 = vxpose.xlu0.b32.cont [8/16] 0.0, 128
      %274 = vxpose.xlu0.b32.cont [9/16] 0.0, 128
      %275 = vxpose.xlu0.b32.cont [10/16] 0.0, 128
      %276 = vxpose.xlu0.b32.cont [11/16] 0.0, 128
      %277 = vxpose.xlu0.b32.cont [12/16] 0.0, 128
      %278 = vxpose.xlu0.b32.cont [13/16] 0.0, 128
      %279 = vxpose.xlu0.b32.cont [14/16] 0.0, 128
      %280 = vxpose.xlu0.b32.cont [15/16] 0.0, 128
      %281 = vxpose.xlu0.b32.end [16/16] 0.0, 128
      %v282 = vpop.trf.xlu0
      %v283 = vpop.trf.xlu0
      %v284 = vpop.trf.xlu0
      %v285 = vpop.trf.xlu0
      %v286 = vpop.trf.xlu0
      %v287 = vpop.trf.xlu0
      %v288 = vpop.trf.xlu0
      %v289 = vpop.trf.xlu0
      %v290 = vpop.trf.xlu0
      %v291 = vpop.trf.xlu0
      %v292 = vpop.trf.xlu0
      %v293 = vpop.trf.xlu0
      %v294 = vpop.trf.xlu0
      %v295 = vpop.trf.xlu0
      %v296 = vpop.trf.xlu0
      %v297 = vpop.trf.xlu0
      %298 = vxpose.xlu0.b32.start [1/16] %v264, 128
      %299 = vxpose.xlu0.b32.cont [2/16] 0.0, 128
      %300 = vxpose.xlu0.b32.cont [3/16] 0.0, 128
      %301 = vxpose.xlu0.b32.cont [4/16] 0.0, 128
      %302 = vxpose.xlu0.b32.cont [5/16] 0.0, 128
      %303 = vxpose.xlu0.b32.cont [6/16] 0.0, 128
      %304 = vxpose.xlu0.b32.cont [7/16] 0.0, 128
      %305 = vxpose.xlu0.b32.cont [8/16] 0.0, 128
      %306 = vxpose.xlu0.b32.cont [9/16] 0.0, 128
      %307 = vxpose.xlu0.b32.cont [10/16] 0.0, 128
      %308 = vxpose.xlu0.b32.cont [11/16] 0.0, 128
      %309 = vxpose.xlu0.b32.cont [12/16] 0.0, 128
      %310 = vxpose.xlu0.b32.cont [13/16] 0.0, 128
      %311 = vxpose.xlu0.b32.cont [14/16] 0.0, 128
      %312 = vxpose.xlu0.b32.cont [15/16] 0.0, 128
      %313 = vxpose.xlu0.b32.end [16/16] 0.0, 128
      %v314 = vpop.trf.xlu0
      %v315 = vpop.trf.xlu0
      %v316 = vpop.trf.xlu0
      %v317 = vpop.trf.xlu0
      %v318 = vpop.trf.xlu0
      %v319 = vpop.trf.xlu0
      %v320 = vpop.trf.xlu0
      %v321 = vpop.trf.xlu0
      %v322 = vpop.trf.xlu0
      %v323 = vpop.trf.xlu0
      %v324 = vpop.trf.xlu0
      %v325 = vpop.trf.xlu0
      %v326 = vpop.trf.xlu0
      %v327 = vpop.trf.xlu0
      %v328 = vpop.trf.xlu0
      %v329 = vpop.trf.xlu0
      %vm330 = vcmask 31744
      %331 = vst.msk [vmem:[#allocation2] sm:$0xff] %vm330, 0.0
      %332 = vst.msk [vmem:[#allocation2 + $0x8] sm:$0xff] %vm330, 0.0
      %vm333 = vcmask 25600
      %334 = vst.msk [vmem:[#allocation2 + $0x10] sm:$0x3] %vm333, 0.0
      %335 = vst.msk [vmem:[#allocation2 + $0x18] sm:$0xff] %vm330, 0.0
      %336 = vst.msk [vmem:[#allocation2 + $0x20] sm:$0xff] %vm330, 0.0
      %337 = vst.msk [vmem:[#allocation2 + $0x28] sm:$0x3] %vm333, 0.0
      %338 = vst.msk [vmem:[#allocation2 + $0x30] sm:$0xff] %vm330, 0.0
      %339 = vst.msk [vmem:[#allocation2 + $0x38] sm:$0xff] %vm330, 0.0
      %340 = vst.msk [vmem:[#allocation2 + $0x40] sm:$0x3] %vm333, 0.0
      %341 = vst.msk [vmem:[#allocation2 + $0x48] sm:$0xff] %vm330, 0.0
      %342 = vst.msk [vmem:[#allocation2 + $0x50] sm:$0xff] %vm330, 0.0
      %343 = vst.msk [vmem:[#allocation2 + $0x58] sm:$0x3] %vm333, 0.0
      %344 = vst.msk [vmem:[#allocation2 + $0x60] sm:$0xff] %vm330, 0.0
      %345 = vst.msk [vmem:[#allocation2 + $0x68] sm:$0xff] %vm330, 0.0
      %346 = vst.msk [vmem:[#allocation2 + $0x70] sm:$0x3] %vm333, 0.0
      %347 = vst.msk [vmem:[#allocation2 + $0x78] sm:$0xff] %vm330, 0.0
      %348 = vst.msk [vmem:[#allocation2 + $0x80] sm:$0xff] %vm330, 0.0
      %349 = vst.msk [vmem:[#allocation2 + $0x88] sm:$0x3] %vm333, 0.0
      %350 = vst.msk [vmem:[#allocation2 + $0x90] sm:$0xff] %vm330, 0.0
      %351 = vst.msk [vmem:[#allocation2 + $0x98] sm:$0xff] %vm330, 0.0
      %352 = vst.msk [vmem:[#allocation2 + $0xa0] sm:$0x3] %vm333, 0.0
      %353 = vst.msk [vmem:[#allocation2 + $0xa8] sm:$0xff] %vm330, 0.0
      %354 = vst.msk [vmem:[#allocation2 + $0xb0] sm:$0xff] %vm330, 0.0
      %355 = vst.msk [vmem:[#allocation2 + $0xb8] sm:$0x3] %vm333, 0.0
      %356 = vst.msk [vmem:[#allocation2 + $0xc0] sm:$0xff] %vm330, 0.0
      %357 = vst.msk [vmem:[#allocation2 + $0xc8] sm:$0xff] %vm330, 0.0
      %358 = vst.msk [vmem:[#allocation2 + $0xd0] sm:$0x3] %vm333, 0.0
      %359 = vst.msk [vmem:[#allocation2 + $0xd8] sm:$0xff] %vm330, 0.0
      %360 = vst.msk [vmem:[#allocation2 + $0xe0] sm:$0xff] %vm330, 0.0
      %361 = vst.msk [vmem:[#allocation2 + $0xe8] sm:$0x3] %vm333, 0.0
      %362 = vst.msk [vmem:[#allocation2 + $0xf0] sm:$0xff] %vm330, 0.0
      %363 = vst.msk [vmem:[#allocation2 + $0xf8] sm:$0xff] %vm330, 0.0
      %364 = vst.msk [vmem:[#allocation2 + $0x100] sm:$0x3] %vm333, 0.0
      %365 = vst.msk [vmem:[#allocation2 + $0x108] sm:$0xff] %vm330, 0.0
      %366 = vst.msk [vmem:[#allocation2 + $0x110] sm:$0xff] %vm330, 0.0
      %367 = vst.msk [vmem:[#allocation2 + $0x118] sm:$0x3] %vm333, 0.0
      %368 = vst.msk [vmem:[#allocation2 + $0x120] sm:$0xff] %vm330, 0.0
      %369 = vst.msk [vmem:[#allocation2 + $0x128] sm:$0xff] %vm330, 0.0
      %370 = vst.msk [vmem:[#allocation2 + $0x130] sm:$0x3] %vm333, 0.0
      %371 = vst.msk [vmem:[#allocation2 + $0x138] sm:$0xff] %vm330, 0.0
      %372 = vst.msk [vmem:[#allocation2 + $0x140] sm:$0xff] %vm330, 0.0
      %373 = vst.msk [vmem:[#allocation2 + $0x148] sm:$0x3] %vm333, 0.0
      %374 = vst.msk [vmem:[#allocation2 + $0x150] sm:$0xff] %vm330, 0.0
      %375 = vst.msk [vmem:[#allocation2 + $0x158] sm:$0xff] %vm330, 0.0
      %376 = vst.msk [vmem:[#allocation2 + $0x160] sm:$0x3] %vm333, 0.0
      %377 = vst.msk [vmem:[#allocation2 + $0x168] sm:$0xff] %vm330, 0.0
      %378 = vst.msk [vmem:[#allocation2 + $0x170] sm:$0xff] %vm330, 0.0
      %379 = vst.msk [vmem:[#allocation2 + $0x178] sm:$0x3] %vm333, 0.0
      %380 = vst.msk [vmem:[#allocation2 + $0x180] sm:$0xff] %vm330, 0.0
      %381 = vst.msk [vmem:[#allocation2 + $0x188] sm:$0xff] %vm330, 0.0
      %382 = vst.msk [vmem:[#allocation2 + $0x190] sm:$0x3] %vm333, 0.0
      %383 = vst.msk [vmem:[#allocation2 + $0x198] sm:$0xff] %vm330, 0.0
      %384 = vst.msk [vmem:[#allocation2 + $0x1a0] sm:$0xff] %vm330, 0.0
      %385 = vst.msk [vmem:[#allocation2 + $0x1a8] sm:$0x3] %vm333, 0.0
      %s386 = scalar_lea.vmem [#allocation2], 24
      %387 = vst.msk [vmem:[%s386 + $0x1] sm:$0xff] %vm330, %v282
      %388 = vst.msk [vmem:[%s386 + $0x9] sm:$0xff] %vm330, %v283
      %389 = vst.msk [vmem:[%s386 + $0x19] sm:$0xff] %vm330, %v284
      %390 = vst.msk [vmem:[%s386 + $0x21] sm:$0xff] %vm330, %v285
      %391 = vst.msk [vmem:[%s386 + $0x31] sm:$0xff] %vm330, %v286
      %392 = vst.msk [vmem:[%s386 + $0x39] sm:$0xff] %vm330, %v287
      %393 = vst.msk [vmem:[%s386 + $0x49] sm:$0xff] %vm330, %v288
      %394 = vst.msk [vmem:[%s386 + $0x51] sm:$0xff] %vm330, %v289
      %395 = vst.msk [vmem:[%s386 + $0x61] sm:$0xff] %vm330, %v290
      %396 = vst.msk [vmem:[%s386 + $0x69] sm:$0xff] %vm330, %v291
      %397 = vst.msk [vmem:[%s386 + $0x79] sm:$0xff] %vm330, %v292
      %398 = vst.msk [vmem:[%s386 + $0x81] sm:$0xff] %vm330, %v293
      %399 = vst.msk [vmem:[%s386 + $0x91] sm:$0xff] %vm330, %v294
      %400 = vst.msk [vmem:[%s386 + $0x99] sm:$0xff] %vm330, %v295
      %401 = vst.msk [vmem:[%s386 + $0xa9] sm:$0xff] %vm330, %v296
      %402 = vst.msk [vmem:[%s386 + $0xb1] sm:$0xff] %vm330, %v297
      %403 = vst.msk [vmem:[%s386 + $0xc1] sm:$0xff] %vm330, %v314
      %404 = vst.msk [vmem:[%s386 + $0xc9] sm:$0xff] %vm330, %v315
      %405 = vst.msk [vmem:[%s386 + $0xd9] sm:$0xff] %vm330, %v316
      %406 = vst.msk [vmem:[%s386 + $0xe1] sm:$0xff] %vm330, %v317
      %407 = vst.msk [vmem:[%s386 + $0xf1] sm:$0xff] %vm330, %v318
      %408 = vst.msk [vmem:[%s386 + $0xf9] sm:$0xff] %vm330, %v319
      %409 = vst.msk [vmem:[%s386 + $0x109] sm:$0xff] %vm330, %v320
      %410 = vst.msk [vmem:[%s386 + $0x111] sm:$0xff] %vm330, %v321
      %411 = vst.msk [vmem:[%s386 + $0x121] sm:$0xff] %vm330, %v322
      %412 = vst.msk [vmem:[%s386 + $0x129] sm:$0xff] %vm330, %v323
      %413 = vst.msk [vmem:[%s386 + $0x139] sm:$0xff] %vm330, %v324
      %414 = vst.msk [vmem:[%s386 + $0x141] sm:$0xff] %vm330, %v325
      %415 = vst.msk [vmem:[%s386 + $0x151] sm:$0xff] %vm330, %v326
      %416 = vst.msk [vmem:[%s386 + $0x159] sm:$0xff] %vm330, %v327
      %417 = vst.msk [vmem:[%s386 + $0x169] sm:$0xff] %vm330, %v328
      %418 = vst.msk [vmem:[%s386 + $0x171] sm:$0xff] %vm330, %v329
      %v419 = vld [vmem:[#allocation2] ss:$2 sm:$0xff]
      %s420 = scalar_lea.vmem [#allocation2], 48
      %v421 = vld [vmem:[%s420] ss:$2 sm:$0xff]
      %s422 = scalar_lea.vmem [#allocation2], 96
      %v423 = vld [vmem:[%s422] ss:$2 sm:$0xff]
      %s424 = scalar_lea.vmem [#allocation2], 144
      %v425 = vld [vmem:[%s424] ss:$2 sm:$0xff]
      %s426 = scalar_lea.vmem [#allocation2], 192
      %v427 = vld [vmem:[%s426] ss:$2 sm:$0xff]
      %s428 = scalar_lea.vmem [#allocation2], 240
      %v429 = vld [vmem:[%s428] ss:$2 sm:$0xff]
      %s430 = scalar_lea.vmem [#allocation2], 288
      %v431 = vld [vmem:[%s430] ss:$2 sm:$0xff]
      %s432 = scalar_lea.vmem [#allocation2], 336
      %v433 = vld [vmem:[%s432] ss:$2 sm:$0xff]
      %434 = vst.msk [vmem:[#allocation3] sm:$0xff] %vm330, %v419
      %435 = vst.msk [vmem:[#allocation3 + $0x8] sm:$0xff] %vm330, %v421
      %436 = vst.msk [vmem:[#allocation3 + $0x10] sm:$0xff] %vm330, %v423
      %437 = vst.msk [vmem:[#allocation3 + $0x18] sm:$0xff] %vm330, %v425
      %438 = vst.msk [vmem:[#allocation3 + $0x20] sm:$0xff] %vm330, %v427
      %439 = vst.msk [vmem:[#allocation3 + $0x28] sm:$0xff] %vm330, %v429
      %440 = vst.msk [vmem:[#allocation3 + $0x30] sm:$0xff] %vm330, %v431
      %441 = vst.msk [vmem:[#allocation3 + $0x38] sm:$0xff] %vm330, %v433
      %s442 = scalar_lea.vmem [#allocation2], 1
      %v443 = vld [vmem:[%s442] ss:$2 sm:$0xff]
      %s444 = scalar_lea.vmem [#allocation2], 49
      %v445 = vld [vmem:[%s444] ss:$2 sm:$0xff]
      %s446 = scalar_lea.vmem [#allocation2], 97
      %v447 = vld [vmem:[%s446] ss:$2 sm:$0xff]
      %s448 = scalar_lea.vmem [#allocation2], 145
      %v449 = vld [vmem:[%s448] ss:$2 sm:$0xff]
      %s450 = scalar_lea.vmem [#allocation2], 193
      %v451 = vld [vmem:[%s450] ss:$2 sm:$0xff]
      %s452 = scalar_lea.vmem [#allocation2], 241
      %v453 = vld [vmem:[%s452] ss:$2 sm:$0xff]
      %s454 = scalar_lea.vmem [#allocation2], 289
      %v455 = vld [vmem:[%s454] ss:$2 sm:$0xff]
      %s456 = scalar_lea.vmem [#allocation2], 337
      %v457 = vld [vmem:[%s456] ss:$2 sm:$0xff]
      %466 = vrot.lane.b32.xlu0 %v443, 4
      %v467 = vpop.permute.xlu0 %466
      %468 = vrot.lane.b32.xlu0 %v445, 4
      %v469 = vpop.permute.xlu0 %468
      %470 = vrot.lane.b32.xlu0 %v447, 4
      %v471 = vpop.permute.xlu0 %470
      %472 = vrot.lane.b32.xlu0 %v449, 4
      %v473 = vpop.permute.xlu0 %472
      %474 = vrot.lane.b32.xlu0 %v451, 4
      %v475 = vpop.permute.xlu0 %474
      %476 = vrot.lane.b32.xlu0 %v453, 4
      %v477 = vpop.permute.xlu0 %476
      %478 = vrot.lane.b32.xlu0 %v455, 4
      %v479 = vpop.permute.xlu0 %478
      %480 = vrot.lane.b32.xlu0 %v457, 4
      %v481 = vpop.permute.xlu0 %480
      %vm490 = vcmask 64544
      %491 = vst.msk [vmem:[#allocation3] sm:$0xff] %vm490, %v467
      %492 = vst.msk [vmem:[#allocation3 + $0x8] sm:$0xff] %vm490, %v469
      %493 = vst.msk [vmem:[#allocation3 + $0x10] sm:$0xff] %vm490, %v471
      %494 = vst.msk [vmem:[#allocation3 + $0x18] sm:$0xff] %vm490, %v473
      %495 = vst.msk [vmem:[#allocation3 + $0x20] sm:$0xff] %vm490, %v475
      %496 = vst.msk [vmem:[#allocation3 + $0x28] sm:$0xff] %vm490, %v477
      %497 = vst.msk [vmem:[#allocation3 + $0x30] sm:$0xff] %vm490, %v479
      %498 = vst.msk [vmem:[#allocation3 + $0x38] sm:$0xff] %vm490, %v481
      %s499 = scalar_lea.vmem [#allocation2], 2
      %v500 = vld [vmem:[%s499] ss:$2 sm:$0xff]
      %s501 = scalar_lea.vmem [#allocation2], 50
      %v502 = vld [vmem:[%s501] ss:$2 sm:$0xff]
      %s503 = scalar_lea.vmem [#allocation2], 98
      %v504 = vld [vmem:[%s503] ss:$2 sm:$0xff]
      %s505 = scalar_lea.vmem [#allocation2], 146
      %v506 = vld [vmem:[%s505] ss:$2 sm:$0xff]
      %s507 = scalar_lea.vmem [#allocation2], 194
      %v508 = vld [vmem:[%s507] ss:$2 sm:$0xff]
      %s509 = scalar_lea.vmem [#allocation2], 242
      %v510 = vld [vmem:[%s509] ss:$2 sm:$0xff]
      %s511 = scalar_lea.vmem [#allocation2], 290
      %v512 = vld [vmem:[%s511] ss:$2 sm:$0xff]
      %s513 = scalar_lea.vmem [#allocation2], 338
      %v514 = vld [vmem:[%s513] ss:$2 sm:$0xff]
      %523 = vrot.lane.b32.xlu0 %v500, 8
      %v524 = vpop.permute.xlu0 %523
      %525 = vrot.lane.b32.xlu0 %v502, 8
      %v526 = vpop.permute.xlu0 %525
      %527 = vrot.lane.b32.xlu0 %v504, 8
      %v528 = vpop.permute.xlu0 %527
      %529 = vrot.lane.b32.xlu0 %v506, 8
      %v530 = vpop.permute.xlu0 %529
      %531 = vrot.lane.b32.xlu0 %v508, 8
      %v532 = vpop.permute.xlu0 %531
      %533 = vrot.lane.b32.xlu0 %v510, 8
      %v534 = vpop.permute.xlu0 %533
      %535 = vrot.lane.b32.xlu0 %v512, 8
      %v536 = vpop.permute.xlu0 %535
      %537 = vrot.lane.b32.xlu0 %v514, 8
      %v538 = vpop.permute.xlu0 %537
      %vm547 = vcmask 97344
      %548 = vst.msk [vmem:[#allocation3] sm:$0xff] %vm547, %v524
      %549 = vst.msk [vmem:[#allocation3 + $0x8] sm:$0xff] %vm547, %v526
      %550 = vst.msk [vmem:[#allocation3 + $0x10] sm:$0xff] %vm547, %v528
      %551 = vst.msk [vmem:[#allocation3 + $0x18] sm:$0xff] %vm547, %v530
      %552 = vst.msk [vmem:[#allocation3 + $0x20] sm:$0xff] %vm547, %v532
      %553 = vst.msk [vmem:[#allocation3 + $0x28] sm:$0xff] %vm547, %v534
      %554 = vst.msk [vmem:[#allocation3 + $0x30] sm:$0xff] %vm547, %v536
      %555 = vst.msk [vmem:[#allocation3 + $0x38] sm:$0xff] %vm547, %v538
      %v556 = vld [vmem:[%s386] ss:$2 sm:$0xff]
      %s557 = scalar_lea.vmem %s386, 48 [#allocation2]
      %v558 = vld [vmem:[%s557] ss:$2 sm:$0xff]
      %s559 = scalar_lea.vmem %s386, 96 [#allocation2]
      %v560 = vld [vmem:[%s559] ss:$2 sm:$0xff]
      %s561 = scalar_lea.vmem %s386, 144 [#allocation2]
      %v562 = vld [vmem:[%s561] ss:$2 sm:$0xff]
      %s563 = scalar_lea.vmem %s386, 192 [#allocation2]
      %v564 = vld [vmem:[%s563] ss:$2 sm:$0xff]
      %s565 = scalar_lea.vmem %s386, 240 [#allocation2]
      %v566 = vld [vmem:[%s565] ss:$2 sm:$0xff]
      %s567 = scalar_lea.vmem %s386, 288 [#allocation2]
      %v568 = vld [vmem:[%s567] ss:$2 sm:$0xff]
      %s569 = scalar_lea.vmem %s386, 336 [#allocation2]
      %v570 = vld [vmem:[%s569] ss:$2 sm:$0xff]
      %579 = vrot.lane.b32.xlu0 %v556, 12
      %v580 = vpop.permute.xlu0 %579
      %581 = vrot.lane.b32.xlu0 %v558, 12
      %v582 = vpop.permute.xlu0 %581
      %583 = vrot.lane.b32.xlu0 %v560, 12
      %v584 = vpop.permute.xlu0 %583
      %585 = vrot.lane.b32.xlu0 %v562, 12
      %v586 = vpop.permute.xlu0 %585
      %587 = vrot.lane.b32.xlu0 %v564, 12
      %v588 = vpop.permute.xlu0 %587
      %589 = vrot.lane.b32.xlu0 %v566, 12
      %v590 = vpop.permute.xlu0 %589
      %591 = vrot.lane.b32.xlu0 %v568, 12
      %v592 = vpop.permute.xlu0 %591
      %593 = vrot.lane.b32.xlu0 %v570, 12
      %v594 = vpop.permute.xlu0 %593
      %vm603 = vcmask 130144
      %604 = vst.msk [vmem:[#allocation3] sm:$0xff] %vm603, %v580
      %605 = vst.msk [vmem:[#allocation3 + $0x8] sm:$0xff] %vm603, %v582
      %606 = vst.msk [vmem:[#allocation3 + $0x10] sm:$0xff] %vm603, %v584
      %607 = vst.msk [vmem:[#allocation3 + $0x18] sm:$0xff] %vm603, %v586
      %608 = vst.msk [vmem:[#allocation3 + $0x20] sm:$0xff] %vm603, %v588
      %609 = vst.msk [vmem:[#allocation3 + $0x28] sm:$0xff] %vm603, %v590
      %610 = vst.msk [vmem:[#allocation3 + $0x30] sm:$0xff] %vm603, %v592
      %611 = vst.msk [vmem:[#allocation3 + $0x38] sm:$0xff] %vm603, %v594
      %s612 = scalar_lea.vmem %s386, 1 [#allocation2]
      %v613 = vld [vmem:[%s612] ss:$2 sm:$0xff]
      %s614 = scalar_lea.vmem %s386, 49 [#allocation2]
      %v615 = vld [vmem:[%s614] ss:$2 sm:$0xff]
      %s616 = scalar_lea.vmem %s386, 97 [#allocation2]
      %v617 = vld [vmem:[%s616] ss:$2 sm:$0xff]
      %s618 = scalar_lea.vmem %s386, 145 [#allocation2]
      %v619 = vld [vmem:[%s618] ss:$2 sm:$0xff]
      %s620 = scalar_lea.vmem %s386, 193 [#allocation2]
      %v621 = vld [vmem:[%s620] ss:$2 sm:$0xff]
      %s622 = scalar_lea.vmem %s386, 241 [#allocation2]
      %v623 = vld [vmem:[%s622] ss:$2 sm:$0xff]
      %s624 = scalar_lea.vmem %s386, 289 [#allocation2]
      %v625 = vld [vmem:[%s624] ss:$2 sm:$0xff]
      %s626 = scalar_lea.vmem %s386, 337 [#allocation2]
      %v627 = vld [vmem:[%s626] ss:$2 sm:$0xff]
      %636 = vrot.lane.b32.xlu0 %v613, 16
      %v637 = vpop.permute.xlu0 %636
      %638 = vrot.lane.b32.xlu0 %v615, 16
      %v639 = vpop.permute.xlu0 %638
      %640 = vrot.lane.b32.xlu0 %v617, 16
      %v641 = vpop.permute.xlu0 %640
      %642 = vrot.lane.b32.xlu0 %v619, 16
      %v643 = vpop.permute.xlu0 %642
      %644 = vrot.lane.b32.xlu0 %v621, 16
      %v645 = vpop.permute.xlu0 %644
      %646 = vrot.lane.b32.xlu0 %v623, 16
      %v647 = vpop.permute.xlu0 %646
      %648 = vrot.lane.b32.xlu0 %v625, 16
      %v649 = vpop.permute.xlu0 %648
      %650 = vrot.lane.b32.xlu0 %v627, 16
      %v651 = vpop.permute.xlu0 %650
      %vm660 = vcmask 162944
      %661 = vst.msk [vmem:[#allocation3] sm:$0xff] %vm660, %v637
      %662 = vst.msk [vmem:[#allocation3 + $0x8] sm:$0xff] %vm660, %v639
      %663 = vst.msk [vmem:[#allocation3 + $0x10] sm:$0xff] %vm660, %v641
      %664 = vst.msk [vmem:[#allocation3 + $0x18] sm:$0xff] %vm660, %v643
      %665 = vst.msk [vmem:[#allocation3 + $0x20] sm:$0xff] %vm660, %v645
      %666 = vst.msk [vmem:[#allocation3 + $0x28] sm:$0xff] %vm660, %v647
      %667 = vst.msk [vmem:[#allocation3 + $0x30] sm:$0xff] %vm660, %v649
      %668 = vst.msk [vmem:[#allocation3 + $0x38] sm:$0xff] %vm660, %v651
      %s669 = scalar_lea.vmem %s386, 2 [#allocation2]
      %v670 = vld [vmem:[%s669] ss:$2 sm:$0xff]
      %s671 = scalar_lea.vmem %s386, 50 [#allocation2]
      %v672 = vld [vmem:[%s671] ss:$2 sm:$0xff]
      %s673 = scalar_lea.vmem %s386, 98 [#allocation2]
      %v674 = vld [vmem:[%s673] ss:$2 sm:$0xff]
      %s675 = scalar_lea.vmem %s386, 146 [#allocation2]
      %v676 = vld [vmem:[%s675] ss:$2 sm:$0xff]
      %s677 = scalar_lea.vmem %s386, 194 [#allocation2]
      %v678 = vld [vmem:[%s677] ss:$2 sm:$0xff]
      %s679 = scalar_lea.vmem %s386, 242 [#allocation2]
      %v680 = vld [vmem:[%s679] ss:$2 sm:$0xff]
      %s681 = scalar_lea.vmem %s386, 290 [#allocation2]
      %v682 = vld [vmem:[%s681] ss:$2 sm:$0xff]
      %s683 = scalar_lea.vmem %s386, 338 [#allocation2]
      %v684 = vld [vmem:[%s683] ss:$2 sm:$0xff]
      %693 = vrot.lane.b32.xlu0 %v670, 20
      %v694 = vpop.permute.xlu0 %693
      %695 = vrot.lane.b32.xlu0 %v672, 20
      %v696 = vpop.permute.xlu0 %695
      %697 = vrot.lane.b32.xlu0 %v674, 20
      %v698 = vpop.permute.xlu0 %697
      %699 = vrot.lane.b32.xlu0 %v676, 20
      %v700 = vpop.permute.xlu0 %699
      %701 = vrot.lane.b32.xlu0 %v678, 20
      %v702 = vpop.permute.xlu0 %701
      %703 = vrot.lane.b32.xlu0 %v680, 20
      %v704 = vpop.permute.xlu0 %703
      %705 = vrot.lane.b32.xlu0 %v682, 20
      %v706 = vpop.permute.xlu0 %705
      %707 = vrot.lane.b32.xlu0 %v684, 20
      %v708 = vpop.permute.xlu0 %707
      %vm717 = vcmask 195744
      %718 = vst.msk [vmem:[#allocation3] sm:$0xff] %vm717, %v694
      %719 = vst.msk [vmem:[#allocation3 + $0x8] sm:$0xff] %vm717, %v696
      %720 = vst.msk [vmem:[#allocation3 + $0x10] sm:$0xff] %vm717, %v698
      %721 = vst.msk [vmem:[#allocation3 + $0x18] sm:$0xff] %vm717, %v700
      %722 = vst.msk [vmem:[#allocation3 + $0x20] sm:$0xff] %vm717, %v702
      %723 = vst.msk [vmem:[#allocation3 + $0x28] sm:$0xff] %vm717, %v704
      %724 = vst.msk [vmem:[#allocation3 + $0x30] sm:$0xff] %vm717, %v706
      %725 = vst.msk [vmem:[#allocation3 + $0x38] sm:$0xff] %vm717, %v708
      %s726 = scalar_lea.vmem [#allocation2], 48
      %v727 = vld [vmem:[%s726] ss:$2 sm:$0xff]
      %s728 = scalar_lea.vmem %s726, 48 [#allocation2]
      %v729 = vld [vmem:[%s728] ss:$2 sm:$0xff]
      %s730 = scalar_lea.vmem %s726, 96 [#allocation2]
      %v731 = vld [vmem:[%s730] ss:$2 sm:$0xff]
      %s732 = scalar_lea.vmem %s726, 144 [#allocation2]
      %v733 = vld [vmem:[%s732] ss:$2 sm:$0xff]
      %s734 = scalar_lea.vmem %s726, 192 [#allocation2]
      %v735 = vld [vmem:[%s734] ss:$2 sm:$0xff]
      %s736 = scalar_lea.vmem %s726, 240 [#allocation2]
      %v737 = vld [vmem:[%s736] ss:$2 sm:$0xff]
      %s738 = scalar_lea.vmem %s726, 288 [#allocation2]
      %v739 = vld [vmem:[%s738] ss:$2 sm:$0xff]
      %s740 = scalar_lea.vmem %s726, 336 [#allocation2]
      %v741 = vld [vmem:[%s740] ss:$2 sm:$0xff]
      %750 = vrot.lane.b32.xlu0 %v727, 24
      %v751 = vpop.permute.xlu0 %750
      %752 = vrot.lane.b32.xlu0 %v729, 24
      %v753 = vpop.permute.xlu0 %752
      %754 = vrot.lane.b32.xlu0 %v731, 24
      %v755 = vpop.permute.xlu0 %754
      %756 = vrot.lane.b32.xlu0 %v733, 24
      %v757 = vpop.permute.xlu0 %756
      %758 = vrot.lane.b32.xlu0 %v735, 24
      %v759 = vpop.permute.xlu0 %758
      %760 = vrot.lane.b32.xlu0 %v737, 24
      %v761 = vpop.permute.xlu0 %760
      %762 = vrot.lane.b32.xlu0 %v739, 24
      %v763 = vpop.permute.xlu0 %762
      %764 = vrot.lane.b32.xlu0 %v741, 24
      %v765 = vpop.permute.xlu0 %764
      %vm774 = vcmask 228544
      %775 = vst.msk [vmem:[#allocation3] sm:$0xff] %vm774, %v751
      %776 = vst.msk [vmem:[#allocation3 + $0x8] sm:$0xff] %vm774, %v753
      %777 = vst.msk [vmem:[#allocation3 + $0x10] sm:$0xff] %vm774, %v755
      %778 = vst.msk [vmem:[#allocation3 + $0x18] sm:$0xff] %vm774, %v757
      %779 = vst.msk [vmem:[#allocation3 + $0x20] sm:$0xff] %vm774, %v759
      %780 = vst.msk [vmem:[#allocation3 + $0x28] sm:$0xff] %vm774, %v761
      %781 = vst.msk [vmem:[#allocation3 + $0x30] sm:$0xff] %vm774, %v763
      %782 = vst.msk [vmem:[#allocation3 + $0x38] sm:$0xff] %vm774, %v765
      %s783 = scalar_lea.vmem %s726, 1 [#allocation2]
      %v784 = vld [vmem:[%s783] ss:$2 sm:$0xff]
      %s785 = scalar_lea.vmem %s726, 49 [#allocation2]
      %v786 = vld [vmem:[%s785] ss:$2 sm:$0xff]
      %s787 = scalar_lea.vmem %s726, 97 [#allocation2]
      %v788 = vld [vmem:[%s787] ss:$2 sm:$0xff]
      %s789 = scalar_lea.vmem %s726, 145 [#allocation2]
      %v790 = vld [vmem:[%s789] ss:$2 sm:$0xff]
      %s791 = scalar_lea.vmem %s726, 193 [#allocation2]
      %v792 = vld [vmem:[%s791] ss:$2 sm:$0xff]
      %s793 = scalar_lea.vmem %s726, 241 [#allocation2]
      %v794 = vld [vmem:[%s793] ss:$2 sm:$0xff]
      %s795 = scalar_lea.vmem %s726, 289 [#allocation2]
      %v796 = vld [vmem:[%s795] ss:$2 sm:$0xff]
      %s797 = scalar_lea.vmem %s726, 337 [#allocation2]
      %v798 = vld [vmem:[%s797] ss:$2 sm:$0xff]
      %807 = vrot.lane.b32.xlu0 %v784, 28
      %v808 = vpop.permute.xlu0 %807
      %809 = vrot.lane.b32.xlu0 %v786, 28
      %v810 = vpop.permute.xlu0 %809
      %811 = vrot.lane.b32.xlu0 %v788, 28
      %v812 = vpop.permute.xlu0 %811
      %813 = vrot.lane.b32.xlu0 %v790, 28
      %v814 = vpop.permute.xlu0 %813
      %815 = vrot.lane.b32.xlu0 %v792, 28
      %v816 = vpop.permute.xlu0 %815
      %817 = vrot.lane.b32.xlu0 %v794, 28
      %v818 = vpop.permute.xlu0 %817
      %819 = vrot.lane.b32.xlu0 %v796, 28
      %v820 = vpop.permute.xlu0 %819
      %821 = vrot.lane.b32.xlu0 %v798, 28
      %v822 = vpop.permute.xlu0 %821
      %vm831 = vcmask 261344
      %832 = vst.msk [vmem:[#allocation3] sm:$0xff] %vm831, %v808
      %833 = vst.msk [vmem:[#allocation3 + $0x8] sm:$0xff] %vm831, %v810
      %834 = vst.msk [vmem:[#allocation3 + $0x10] sm:$0xff] %vm831, %v812
      %835 = vst.msk [vmem:[#allocation3 + $0x18] sm:$0xff] %vm831, %v814
      %836 = vst.msk [vmem:[#allocation3 + $0x20] sm:$0xff] %vm831, %v816
      %837 = vst.msk [vmem:[#allocation3 + $0x28] sm:$0xff] %vm831, %v818
      %838 = vst.msk [vmem:[#allocation3 + $0x30] sm:$0xff] %vm831, %v820
      %839 = vst.msk [vmem:[#allocation3 + $0x38] sm:$0xff] %vm831, %v822
      %s840 = scalar_lea.vmem %s726, 2 [#allocation2]
      %v841 = vld [vmem:[%s840] ss:$2 sm:$0xff]
      %s842 = scalar_lea.vmem %s726, 50 [#allocation2]
      %v843 = vld [vmem:[%s842] ss:$2 sm:$0xff]
      %s844 = scalar_lea.vmem %s726, 98 [#allocation2]
      %v845 = vld [vmem:[%s844] ss:$2 sm:$0xff]
      %s846 = scalar_lea.vmem %s726, 146 [#allocation2]
      %v847 = vld [vmem:[%s846] ss:$2 sm:$0xff]
      %s848 = scalar_lea.vmem %s726, 194 [#allocation2]
      %v849 = vld [vmem:[%s848] ss:$2 sm:$0xff]
      %s850 = scalar_lea.vmem %s726, 242 [#allocation2]
      %v851 = vld [vmem:[%s850] ss:$2 sm:$0xff]
      %s852 = scalar_lea.vmem %s726, 290 [#allocation2]
      %v853 = vld [vmem:[%s852] ss:$2 sm:$0xff]
      %s854 = scalar_lea.vmem %s726, 338 [#allocation2]
      %v855 = vld [vmem:[%s854] ss:$2 sm:$0xff]
      %864 = vrot.lane.b32.xlu0 %v841, 32
      %v865 = vpop.permute.xlu0 %864
      %866 = vrot.lane.b32.xlu0 %v843, 32
      %v867 = vpop.permute.xlu0 %866
      %868 = vrot.lane.b32.xlu0 %v845, 32
      %v869 = vpop.permute.xlu0 %868
      %870 = vrot.lane.b32.xlu0 %v847, 32
      %v871 = vpop.permute.xlu0 %870
      %872 = vrot.lane.b32.xlu0 %v849, 32
      %v873 = vpop.permute.xlu0 %872
      %874 = vrot.lane.b32.xlu0 %v851, 32
      %v875 = vpop.permute.xlu0 %874
      %876 = vrot.lane.b32.xlu0 %v853, 32
      %v877 = vpop.permute.xlu0 %876
      %878 = vrot.lane.b32.xlu0 %v855, 32
      %v879 = vpop.permute.xlu0 %878
      %vm888 = vcmask 294144
      %889 = vst.msk [vmem:[#allocation3] sm:$0xff] %vm888, %v865
      %890 = vst.msk [vmem:[#allocation3 + $0x8] sm:$0xff] %vm888, %v867
      %891 = vst.msk [vmem:[#allocation3 + $0x10] sm:$0xff] %vm888, %v869
      %892 = vst.msk [vmem:[#allocation3 + $0x18] sm:$0xff] %vm888, %v871
      %893 = vst.msk [vmem:[#allocation3 + $0x20] sm:$0xff] %vm888, %v873
      %894 = vst.msk [vmem:[#allocation3 + $0x28] sm:$0xff] %vm888, %v875
      %895 = vst.msk [vmem:[#allocation3 + $0x30] sm:$0xff] %vm888, %v877
      %896 = vst.msk [vmem:[#allocation3 + $0x38] sm:$0xff] %vm888, %v879
      %v897 = vld [vmem:[#allocation3] sm:$0xff]
      %v898 = vld [vmem:[#allocation3 + $0x8] sm:$0xff]
      %v899 = vld [vmem:[#allocation3 + $0x10] sm:$0xff]
      %v900 = vld [vmem:[#allocation3 + $0x18] sm:$0xff]
      %v901 = vld [vmem:[#allocation3 + $0x20] sm:$0xff]
      %v902 = vld [vmem:[#allocation3 + $0x28] sm:$0xff]
      %v903 = vld [vmem:[#allocation3 + $0x30] sm:$0xff]
      %v904 = vld [vmem:[#allocation3 + $0x38] sm:$0xff]
      %v905 = vld [vmem:[%s3] sm:$0xff]
      %v906 = vld [vmem:[%s3 + $0x8] sm:$0xff]
      %v907 = vld [vmem:[%s3 + $0x10] sm:$0xff]
      %v908 = vld [vmem:[%s3 + $0x18] sm:$0xff]
      %v909 = vld [vmem:[%s3 + $0x20] sm:$0xf]
      %vm910 = vcmask 293888
      %v912 = vsel %vm910, %v897, 0
      %v915 = vsel %vm910, %v898, 0
      %v918 = vsel %vm910, %v899, 0
      %v921 = vsel %vm910, %v900, 0
      %v924 = vsel %vm910, %v901, 0
      %v927 = vsel %vm910, %v902, 0
      %v930 = vsel %vm910, %v903, 0
      %v933 = vsel %vm910, %v904, 0
      %vm935 = vcmask 1043456
      %v937 = vsel %vm935, %v909, 0
      %939 = vmatprep.subr.mxu0 0.0
      %940 = vmatpush1.msra.mxu0 0.0
      %941 = vmatprep.subr.mxu0 0.0
      %942 = vmatpush1.msra.mxu0 0.0
      %943 = vmatprep.subr.mxu0 0.0
      %944 = vmatpush1.msra.mxu0 0.0
      %945 = vmatprep.subr.mxu0 0.0
      %946 = vmatpush1.msra.mxu0 0.0
      %947 = vmatprep.subr.mxu0 0.0
      %948 = vmatpush1.msra.mxu0 0.0
      %949 = vmatprep.subr.mxu0 0.0
      %950 = vmatpush1.msra.mxu0 0.0
      %951 = vmatprep.subr.mxu0 0.0
      %952 = vmatpush1.msra.mxu0 0.0
      %953 = vmatprep.subr.mxu0 0.0
      %954 = vmatpush1.msra.mxu0 0.0
      %955 = vmatprep.subr.mxu0 0.0
      %956 = vmatpush1.msra.mxu0 0.0
      %957 = vmatprep.subr.mxu0 0.0
      %958 = vmatpush1.msra.mxu0 0.0
      %959 = vmatprep.subr.mxu0 0.0
      %960 = vmatpush1.msra.mxu0 0.0
      %961 = vmatprep.subr.mxu0 0.0
      %962 = vmatpush1.msra.mxu0 %v937
      %963 = vmatprep.subr.mxu0 0.0
      %964 = vmatpush1.msra.mxu0 %v908
      %965 = vmatprep.subr.mxu0 0.0
      %966 = vmatpush1.msra.mxu0 %v907
      %967 = vmatprep.subr.mxu0 0.0
      %968 = vmatpush1.msra.mxu0 %v906
      %969 = vmatprep.subr.mxu0 0.0
      %970 = vmatpush1.msra.mxu0 %v905
      %971 = vmatprep.subr.mxu0 0.0
      %972 = vmatpush2.msra.mxu0 0.0
      %973 = vmatprep.subr.mxu0 0.0
      %974 = vmatpush2.msra.mxu0 0.0
      %975 = vmatprep.subr.mxu0 0.0
      %976 = vmatpush2.msra.mxu0 0.0
      %977 = vmatprep.subr.mxu0 0.0
      %978 = vmatpush2.msra.mxu0 0.0
      %979 = vmatprep.subr.mxu0 0.0
      %980 = vmatpush2.msra.mxu0 0.0
      %981 = vmatprep.subr.mxu0 0.0
      %982 = vmatpush2.msra.mxu0 0.0
      %983 = vmatprep.subr.mxu0 0.0
      %984 = vmatpush2.msra.mxu0 0.0
      %985 = vmatprep.subr.mxu0 0.0
      %986 = vmatpush2.msra.mxu0 0.0
      %987 = vmatprep.subr.mxu0 0.0
      %988 = vmatpush2.msra.mxu0 0.0
      %989 = vmatprep.subr.mxu0 0.0
      %990 = vmatpush2.msra.mxu0 0.0
      %991 = vmatprep.subr.mxu0 0.0
      %992 = vmatpush2.msra.mxu0 0.0
      %993 = vmatprep.subr.mxu0 0.0
      %994 = vmatpush2.msra.mxu0 0.0
      %995 = vmatprep.subr.mxu0 0.0
      %996 = vmatpush2.msra.mxu0 0.0
      %997 = vmatprep.subr.mxu0 0.0
      %998 = vmatpush2.msra.mxu0 0.0
      %999 = vmatprep.subr.mxu0 0.0
      %1000 = vmatpush2.msra.mxu0 0.0
      %1001 = vmatprep.subr.mxu0 0.0
      %1002 = vmatpush2.msra.mxu0 0.0
      %1003 = vmatprep.mubr.f32.mxu0 0.0
      %1004 = vmatmul.mubr.f32.gmra.mxu0 %v912
      %v1005 = vpop.f32.mrf.mxu0
      %v1006 = vadd.f32 0.0, %v1005
      %v1007 = vpop.f32.mrf.mxu0
      %1008 = vmatprep.mubr.f32.mxu0 0.0
      %1009 = vmatmul.mubr.f32.gmra.mxu0 %v915
      %v1010 = vpop.f32.mrf.mxu0
      %v1011 = vadd.f32 0.0, %v1010
      %v1012 = vpop.f32.mrf.mxu0
      %1013 = vmatprep.mubr.f32.mxu0 0.0
      %1014 = vmatmul.mubr.f32.gmra.mxu0 %v918
      %v1015 = vpop.f32.mrf.mxu0
      %v1016 = vadd.f32 0.0, %v1015
      %v1017 = vpop.f32.mrf.mxu0
      %1018 = vmatprep.mubr.f32.mxu0 0.0
      %1019 = vmatmul.mubr.f32.gmra.mxu0 %v921
      %v1020 = vpop.f32.mrf.mxu0
      %v1021 = vadd.f32 0.0, %v1020
      %v1022 = vpop.f32.mrf.mxu0
      %1023 = vmatprep.mubr.f32.mxu0 0.0
      %1024 = vmatmul.mubr.f32.gmra.mxu0 %v924
      %v1025 = vpop.f32.mrf.mxu0
      %v1026 = vadd.f32 0.0, %v1025
      %v1027 = vpop.f32.mrf.mxu0
      %1028 = vmatprep.mubr.f32.mxu0 0.0
      %1029 = vmatmul.mubr.f32.gmra.mxu0 %v927
      %v1030 = vpop.f32.mrf.mxu0
      %v1031 = vadd.f32 0.0, %v1030
      %v1032 = vpop.f32.mrf.mxu0
      %1033 = vmatprep.mubr.f32.mxu0 0.0
      %1034 = vmatmul.mubr.f32.gmra.mxu0 %v930
      %v1035 = vpop.f32.mrf.mxu0
      %v1036 = vadd.f32 0.0, %v1035
      %v1037 = vpop.f32.mrf.mxu0
      %1038 = vmatprep.mubr.f32.mxu0 0.0
      %1039 = vmatmul.mubr.f32.gmra.mxu0 %v933
      %v1040 = vpop.f32.mrf.mxu0
      %v1041 = vadd.f32 0.0, %v1040
      %v1042 = vpop.f32.mrf.mxu0
      %1043 = vdwg.mxu0
      %vm1044 = vcmask 64512
      %v1045 = vsel %vm1044, %v1006, 0.0
      %v1046 = vsel %vm1044, %v1011, 0.0
      %v1047 = vadd.f32 %v1045, %v1046
      %v1048 = vsel %vm1044, %v1016, 0.0
      %v1049 = vadd.f32 %v1047, %v1048
      %v1050 = vsel %vm1044, %v1021, 0.0
      %v1051 = vadd.f32 %v1049, %v1050
      %v1052 = vsel %vm1044, %v1026, 0.0
      %v1053 = vadd.f32 %v1051, %v1052
      %v1054 = vsel %vm1044, %v1031, 0.0
      %v1055 = vadd.f32 %v1053, %v1054
      %v1056 = vsel %vm1044, %v1036, 0.0
      %v1057 = vadd.f32 %v1055, %v1056
      %v1058 = vsel %vm1044, %v1041, 0.0
      %v1059 = vadd.f32 %v1057, %v1058
      %v1060 = vrot.slane %v1059, 4
      %v1061 = vadd.f32 %v1059, %v1060
      %v1062 = vrot.slane %v1061, 2
      %v1063 = vadd.f32 %v1061, %v1062
      %v1064 = vrot.slane %v1063, 1
      %v1065 = vadd.f32 %v1063, %v1064
      %vm1066 = vcmask 57344
      %1067 = vst.msk [vmem:[%s233] sm:$0x1] %vm1066, %v1065
      %v1068 = vmul.f32 %v1006, %v1006
      %v1069 = vmul.f32 %v1011, %v1011
      %v1070 = vmul.f32 %v1016, %v1016
      %v1071 = vmul.f32 %v1021, %v1021
      %v1072 = vmul.f32 %v1026, %v1026
      %v1073 = vmul.f32 %v1031, %v1031
      %v1074 = vmul.f32 %v1036, %v1036
      %v1075 = vmul.f32 %v1041, %v1041
      %v1076 = vsel %vm1044, %v1068, 0.0
      %v1077 = vsel %vm1044, %v1069, 0.0
      %v1078 = vadd.f32 %v1076, %v1077
      %v1079 = vsel %vm1044, %v1070, 0.0
      %v1080 = vadd.f32 %v1078, %v1079
      %v1081 = vsel %vm1044, %v1071, 0.0
      %v1082 = vadd.f32 %v1080, %v1081
      %v1083 = vsel %vm1044, %v1072, 0.0
      %v1084 = vadd.f32 %v1082, %v1083
      %v1085 = vsel %vm1044, %v1073, 0.0
      %v1086 = vadd.f32 %v1084, %v1085
      %v1087 = vsel %vm1044, %v1074, 0.0
      %v1088 = vadd.f32 %v1086, %v1087
      %v1089 = vsel %vm1044, %v1075, 0.0
      %v1090 = vadd.f32 %v1088, %v1089
      %v1091 = vrot.slane %v1090, 4
      %v1092 = vadd.f32 %v1090, %v1091
      %v1093 = vrot.slane %v1092, 2
      %v1094 = vadd.f32 %v1092, %v1093
      %v1095 = vrot.slane %v1094, 1
      %v1096 = vadd.f32 %v1094, %v1095
      %1097 = vst.msk [vmem:[%s233 + $0x1] sm:$0x1] %vm1066, %v1096
      %1098 = vxpose.xlu0.b32.start [1/16] %v1006, 128
      %1099 = vxpose.xlu0.b32.cont [2/16] %v1011, 128
      %1100 = vxpose.xlu0.b32.cont [3/16] %v1016, 128
      %1101 = vxpose.xlu0.b32.cont [4/16] %v1021, 128
      %1102 = vxpose.xlu0.b32.cont [5/16] %v1026, 128
      %1103 = vxpose.xlu0.b32.cont [6/16] %v1031, 128
      %1104 = vxpose.xlu0.b32.cont [7/16] %v1036, 128
      %1105 = vxpose.xlu0.b32.cont [8/16] %v1041, 128
      %1106 = vxpose.xlu0.b32.cont [9/16] 0.0, 128
      %1107 = vxpose.xlu0.b32.cont [10/16] 0.0, 128
      %1108 = vxpose.xlu0.b32.cont [11/16] 0.0, 128
      %1109 = vxpose.xlu0.b32.cont [12/16] 0.0, 128
      %1110 = vxpose.xlu0.b32.cont [13/16] 0.0, 128
      %1111 = vxpose.xlu0.b32.cont [14/16] 0.0, 128
      %1112 = vxpose.xlu0.b32.cont [15/16] 0.0, 128
      %1113 = vxpose.xlu0.b32.end [16/16] 0.0, 128
      %v1114 = vpop.trf.xlu0
      %v1115 = vpop.trf.xlu0
      %v1116 = vpop.trf.xlu0
      %v1117 = vpop.trf.xlu0
      %v1118 = vpop.trf.xlu0
      %v1119 = vpop.trf.xlu0
      %v1120 = vpop.trf.xlu0
      %v1121 = vpop.trf.xlu0
      %v1122 = vpop.trf.xlu0
      %v1123 = vpop.trf.xlu0
      %v1124 = vpop.trf.xlu0
      %v1125 = vpop.trf.xlu0
      %v1126 = vpop.trf.xlu0
      %v1127 = vpop.trf.xlu0
      %v1128 = vpop.trf.xlu0
      %v1129 = vpop.trf.xlu0
      %vm1130 = vcmask 523264
      %1131 = vst.msk [vmem:[%s229] sm:$0xff] %vm1130, %v1114
      %p1132 = scmp.lt.s32.totalorder %s17, 1
      %s1133 = scalar_select %p1132, %s17, 1
      %s1134 = smul.addr %s1133, 8
      %s1135 = scalar_lea.vmem %s4, %s1134
      %p1136 = scmp.lt.s32.totalorder %s17, 1
      %s1137 = scalar_select %p1136, %s17, 1
      %s1138 = smul.addr %s1137, 2
      %s1139 = scalar_lea.vmem %s5, %s1138
      // Predicated region
      $region37: #{double_conv2_forward.3} parent=35 // pred_check
        %p1140 = pneg %p124
      $region38: #{double_conv2_forward.3} parent=35 // pred_check_branch
        %1142 = sbr.rel (%p1140) target = $region40
      $region39: #{double_conv2_forward.3} parent=35 // pred_region
        _
      $region40: #{double_conv2_forward.3} parent=35 // pred_fallthru
        _
      // Predicated region
      $region41: #{double_conv2_forward.3} parent=35 // pred_check
        %p1143 = pneg %p150
      $region42: #{double_conv2_forward.3} parent=35 // pred_check_branch
        %1145 = sbr.rel (%p1143) target = $region44
      $region43: #{double_conv2_forward.3} parent=35 // pred_region
        _
      $region44: #{double_conv2_forward.3} parent=35 // pred_fallthru
        _
    $region36: #{double_conv2_forward.3} parent=5 // pred_fallthru
      _
    %p1146 = scmp.le.s32.totalorder 2, %s12
    // Predicated region
    $region45: #{double_conv2_forward.3} parent=5 // pred_check
      %p1147 = pneg %p1146
    $region46: #{double_conv2_forward.3} parent=5 // pred_check_branch
      %1149 = sbr.rel (%p1147) target = $region48
    $region47: #{double_conv2_forward.3} parent=5 // pred_region
      %s1150 = ssub.s32 %s12, 2
      // Predicated region
      $region49: #{double_conv2_forward.3} parent=47 // pred_check
        %p1151 = pneg %p130
      $region50: #{double_conv2_forward.3} parent=47 // pred_check_branch
        %1153 = sbr.rel (%p1151) target = $region52
      $region51: #{double_conv2_forward.3} parent=47 // pred_region
        %p1154 = scmp.lt.s32.totalorder %s18, 1
        %s1155 = scalar_select %p1154, %s18, 1
        %s1156 = smul.addr %s1155, 8
        %s1157 = scalar_lea.vmem %s4, %s1156
      $region52: #{double_conv2_forward.3} parent=47 // pred_fallthru
        _
      // Predicated region
      $region53: #{double_conv2_forward.3} parent=47 // pred_check
        %p1158 = pneg %p156
      $region54: #{double_conv2_forward.3} parent=47 // pred_check_branch
        %1160 = sbr.rel (%p1158) target = $region56
      $region55: #{double_conv2_forward.3} parent=47 // pred_region
        %p1161 = scmp.lt.s32.totalorder %s18, 1
        %s1162 = scalar_select %p1161, %s18, 1
        %s1163 = smul.addr %s1162, 2
        %s1164 = scalar_lea.vmem %s5, %s1163
      $region56: #{double_conv2_forward.3} parent=47 // pred_fallthru
        _
    $region48: #{double_conv2_forward.3} parent=5 // pred_fallthru
      _
  $region6: #{double_conv2_forward.3} parent=0 // loop_footer
    %s16 = sadd.s32 1, %s12
  $region7: #{double_conv2_forward.3} parent=0 // loop_footer_branch
    %11 = sbr.rel target = $region3
  $region8: #{double_conv2_forward.3} parent=0 // loop_exit
    _

// kernel: double_conv2_forward.4
$region0: #{double_conv2_forward.4}
  #allocation0 [shape = 'u32[]', space=smem, size = 0x4, offset = 0x4, fixed_abs, tag = 'smem constant byte address 0x4 - core index']
  #allocation1 [shape = 'u32[144,128]{1,0:T(1,128)}', space=vmem, size = 0x12000, scoped, tag = 'internal scratch']
  #allocation2 [shape = 'f32[10,10,8]{2,1,0:T(8,128)}', space=vmem, size = 0x14000, scoped, tag = 'scratch operand']
  #allocation3 [shape = 'f32[64,72]{1,0:T(8,128)}', space=vmem, size = 0x8000, scoped, tag = 'scratch operand']
  %s0 = inlined_call_operand.vmem [shape: f32[2,8,64], index: 0, kind: input, shape index: {}]
  %s1 = inlined_call_operand.vmem [shape: f32[8,1], index: 1, kind: input, shape index: {}]
  %s2 = inlined_call_operand.vmem [shape: f32[8,1], index: 2, kind: input, shape index: {}]
  %s3 = inlined_call_operand.vmem [shape: f32[72,8], index: 3, kind: input, shape index: {}]
  %s4 = inlined_call_operand.vmem [shape: f32[2,8,64], index: 4, kind: output, shape index: {0}]
  %s5 = inlined_call_operand.vmem [shape: f32[2,2,8], index: 5, kind: output, shape index: {1}]
  %6 = xla_tuple %s4, %s5
  %s7 = sld [smem:[#allocation0]]
  $region57: #{double_conv2_forward.4} parent=0
    _
  %s9 = ssub.s32 1, %s7
  %s10 = scalar_select 0, %s9, %s7
  loop: start=0, step=1, limit=4
  $region2: #{double_conv2_forward.4} parent=0 // loop_pre_header
    _
  $region3: #{double_conv2_forward.4} parent=0 // loop_header
    %s12 = sphi 0, %s16
    %p13 = scmp.ge.s32.totalorder %s12, 4
    %s22 = sphi 0, %s24
    %s25 = sphi 0, %s22
    %s26 = sphi 0, %s25
    %s42 = sphi 0, %s26
    %s46 = sphi 0, %s46
    %s48 = sphi 0, %s46
    %s49 = sphi 0, %s48
    %s63 = sphi 0, %s49
    %s67 = sphi 0, %s67
    %s69 = sphi 0, %s67
    %s70 = sphi 0, %s69
    %s84 = sphi 0, %s70
    %s88 = sphi 0, %s88
    %s90 = sphi 0, %s88
    %s91 = sphi 0, %s90
    %s105 = sphi 0, %s91
    %s111 = sphi 0, %s113
    %s114 = sphi 0, %s111
    %s115 = sphi 0, %s114
    %s131 = sphi 0, %s115
    %s137 = sphi 0, %s139
    %s140 = sphi 0, %s137
    %s141 = sphi 0, %s140
    %s157 = sphi 0, %s141
  $region4: #{double_conv2_forward.4} parent=0 // loop_header_branch
    %15 = sbr.rel (%p13) target = $region8
  $region5: #{double_conv2_forward.4} parent=0 // loop_body
    %s17 = ssub.s32 %s12, 1
    %s18 = ssub.s32 %s12, 2
    %s19 = sadd.s32 %s12, 1
    %s20 = ssub.s32 %s12, %s19
    %p21 = scmp.eq.s32.totalorder %s20, 0
    %s23 = sadd.s32 %s22, 1
    %s24 = scalar_select %p21, %s22, %s23
    %p27 = pneg %p21
    %p28 = scmp.eq.s32.totalorder %s12, 1
    %p29 = por %p27, %p28
    %p30 = scmp.ne.s32.totalorder %s22, %s25
    %p31 = scmp.eq.s32.totalorder %s12, 0
    %p32 = por %p30, %p31
    %p33 = scmp.ne.s32.totalorder %s22, %s25
    %p34 = scmp.eq.s32.totalorder %s17, 1
    %p35 = por %p33, %p34
    %p36 = scmp.ne.s32.totalorder %s25, %s26
    %p37 = scmp.eq.s32.totalorder %s17, 0
    %p38 = por %p36, %p37
    %p39 = scmp.ne.s32.totalorder %s25, %s26
    %p40 = scmp.eq.s32.totalorder %s18, 1
    %p41 = por %p39, %p40
    %p43 = scmp.ne.s32.totalorder %s26, %s42
    %p44 = scmp.eq.s32.totalorder %s18, 0
    %p45 = por %p43, %p44
    %s47 = sadd.s32 %s46, 1
    %p50 = scmp.eq.s32.totalorder %s12, 1
    %p51 = scmp.ne.s32.totalorder %s46, %s48
    %p52 = scmp.eq.s32.totalorder %s12, 0
    %p53 = por %p51, %p52
    %p54 = scmp.ne.s32.totalorder %s46, %s48
    %p55 = scmp.eq.s32.totalorder %s17, 1
    %p56 = por %p54, %p55
    %p57 = scmp.ne.s32.totalorder %s48, %s49
    %p58 = scmp.eq.s32.totalorder %s17, 0
    %p59 = por %p57, %p58
    %p60 = scmp.ne.s32.totalorder %s48, %s49
    %p61 = scmp.eq.s32.totalorder %s18, 1
    %p62 = por %p60, %p61
    %p64 = scmp.ne.s32.totalorder %s49, %s63
    %p65 = scmp.eq.s32.totalorder %s18, 0
    %p66 = por %p64, %p65
    %s68 = sadd.s32 %s67, 1
    %p71 = scmp.eq.s32.totalorder %s12, 1
    %p72 = scmp.ne.s32.totalorder %s67, %s69
    %p73 = scmp.eq.s32.totalorder %s12, 0
    %p74 = por %p72, %p73
    %p75 = scmp.ne.s32.totalorder %s67, %s69
    %p76 = scmp.eq.s32.totalorder %s17, 1
    %p77 = por %p75, %p76
    %p78 = scmp.ne.s32.totalorder %s69, %s70
    %p79 = scmp.eq.s32.totalorder %s17, 0
    %p80 = por %p78, %p79
    %p81 = scmp.ne.s32.totalorder %s69, %s70
    %p82 = scmp.eq.s32.totalorder %s18, 1
    %p83 = por %p81, %p82
    %p85 = scmp.ne.s32.totalorder %s70, %s84
    %p86 = scmp.eq.s32.totalorder %s18, 0
    %p87 = por %p85, %p86
    %s89 = sadd.s32 %s88, 1
    %p92 = scmp.eq.s32.totalorder %s12, 1
    %p93 = scmp.ne.s32.totalorder %s88, %s90
    %p94 = scmp.eq.s32.totalorder %s12, 0
    %p95 = por %p93, %p94
    %p96 = scmp.ne.s32.totalorder %s88, %s90
    %p97 = scmp.eq.s32.totalorder %s17, 1
    %p98 = por %p96, %p97
    %p99 = scmp.ne.s32.totalorder %s90, %s91
    %p100 = scmp.eq.s32.totalorder %s17, 0
    %p101 = por %p99, %p100
    %p102 = scmp.ne.s32.totalorder %s90, %s91
    %p103 = scmp.eq.s32.totalorder %s18, 1
    %p104 = por %p102, %p103
    %p106 = scmp.ne.s32.totalorder %s91, %s105
    %p107 = scmp.eq.s32.totalorder %s18, 0
    %p108 = por %p106, %p107
    %s109 = ssub.s32 %s12, %s19
    %p110 = scmp.eq.s32.totalorder %s109, 0
    %s112 = sadd.s32 %s111, 1
    %s113 = scalar_select %p110, %s111, %s112
    %p116 = pneg %p110
    %p117 = scmp.eq.s32.totalorder %s12, 1
    %p118 = por %p116, %p117
    %p119 = scmp.ne.s32.totalorder %s111, %s114
    %p120 = scmp.eq.s32.totalorder %s12, 0
    %p121 = por %p119, %p120
    %p122 = scmp.ne.s32.totalorder %s111, %s114
    %p123 = scmp.eq.s32.totalorder %s17, 1
    %p124 = por %p122, %p123
    %p125 = scmp.ne.s32.totalorder %s114, %s115
    %p126 = scmp.eq.s32.totalorder %s17, 0
    %p127 = por %p125, %p126
    %p128 = scmp.ne.s32.totalorder %s114, %s115
    %p129 = scmp.eq.s32.totalorder %s18, 1
    %p130 = por %p128, %p129
    %p132 = scmp.ne.s32.totalorder %s115, %s131
    %p133 = scmp.eq.s32.totalorder %s18, 0
    %p134 = por %p132, %p133
    %s135 = ssub.s32 %s12, %s19
    %p136 = scmp.eq.s32.totalorder %s135, 0
    %s138 = sadd.s32 %s137, 1
    %s139 = scalar_select %p136, %s137, %s138
    %p142 = pneg %p136
    %p143 = scmp.eq.s32.totalorder %s12, 1
    %p144 = por %p142, %p143
    %p145 = scmp.ne.s32.totalorder %s137, %s140
    %p146 = scmp.eq.s32.totalorder %s12, 0
    %p147 = por %p145, %p146
    %p148 = scmp.ne.s32.totalorder %s137, %s140
    %p149 = scmp.eq.s32.totalorder %s17, 1
    %p150 = por %p148, %p149
    %p151 = scmp.ne.s32.totalorder %s140, %s141
    %p152 = scmp.eq.s32.totalorder %s17, 0
    %p153 = por %p151, %p152
    %p154 = scmp.ne.s32.totalorder %s140, %s141
    %p155 = scmp.eq.s32.totalorder %s18, 1
    %p156 = por %p154, %p155
    %p158 = scmp.ne.s32.totalorder %s141, %s157
    %p159 = scmp.eq.s32.totalorder %s18, 0
    %p160 = por %p158, %p159
    %p161 = scmp.le.s32.totalorder 1, %s12
    %p162 = scmp.lt.s32.totalorder %s12, 3
    %p163 = pnand %p161, %p162
    %p164 = pneg %p163
    // Predicated region
    $region9: #{double_conv2_forward.4} parent=5 // pred_check
      _
    $region10: #{double_conv2_forward.4} parent=5 // pred_check_branch
      %166 = sbr.rel (%p163) target = $region12
    $region11: #{double_conv2_forward.4} parent=5 // pred_region
      %s167 = ssub.s32 %s12, 1
      // Predicated region
      $region13: #{double_conv2_forward.4} parent=11 // pred_check
        %p168 = pneg %p59
      $region14: #{double_conv2_forward.4} parent=11 // pred_check_branch
        %170 = sbr.rel (%p168) target = $region16
      $region15: #{double_conv2_forward.4} parent=11 // pred_region
        _
      $region16: #{double_conv2_forward.4} parent=11 // pred_fallthru
        _
      // Predicated region
      $region17: #{double_conv2_forward.4} parent=11 // pred_check
        %p171 = pneg %p80
      $region18: #{double_conv2_forward.4} parent=11 // pred_check_branch
        %173 = sbr.rel (%p171) target = $region20
      $region19: #{double_conv2_forward.4} parent=11 // pred_region
        _
      $region20: #{double_conv2_forward.4} parent=11 // pred_fallthru
        _
      // Predicated region
      $region21: #{double_conv2_forward.4} parent=11 // pred_check
        %p174 = pneg %p101
      $region22: #{double_conv2_forward.4} parent=11 // pred_check_branch
        %176 = sbr.rel (%p174) target = $region24
      $region23: #{double_conv2_forward.4} parent=11 // pred_region
        _
      $region24: #{double_conv2_forward.4} parent=11 // pred_fallthru
        _
    $region12: #{double_conv2_forward.4} parent=5 // pred_fallthru
      _
    %p177 = scmp.lt.s32.totalorder %s12, 2
    // Predicated region
    $region25: #{double_conv2_forward.4} parent=5 // pred_check
      %p178 = pneg %p177
    $region26: #{double_conv2_forward.4} parent=5 // pred_check_branch
      %180 = sbr.rel (%p178) target = $region28
    $region27: #{double_conv2_forward.4} parent=5 // pred_region
      // Predicated region
      $region29: #{double_conv2_forward.4} parent=27 // pred_check
        %p181 = pneg %p32
      $region30: #{double_conv2_forward.4} parent=27 // pred_check_branch
        %183 = sbr.rel (%p181) target = $region32
      $region31: #{double_conv2_forward.4} parent=27 // pred_region
        %p184 = scmp.lt.s32.totalorder %s12, 1
        %s185 = scalar_select %p184, %s12, 1
        %s186 = smul.addr %s185, 8
        %s187 = scalar_lea.vmem %s0, %s186
      $region32: #{double_conv2_forward.4} parent=27 // pred_fallthru
        _
    $region28: #{double_conv2_forward.4} parent=5 // pred_fallthru
      _
    %p188 = scmp.le.s32.totalorder 1, %s12
    %p189 = scmp.lt.s32.totalorder %s12, 3
    %p190 = pnand %p188, %p189
    %p191 = pneg %p190
    // Predicated region
    $region33: #{double_conv2_forward.4} parent=5 // pred_check
      _
    $region34: #{double_conv2_forward.4} parent=5 // pred_check_branch
      %193 = sbr.rel (%p190) target = $region36
    $region35: #{double_conv2_forward.4} parent=5 // pred_region
      %s194 = ssub.s32 %s12, 1
      %p195 = scmp.lt.s32.totalorder %s17, 1
      %s196 = scalar_select %p195, %s17, 1
      %s197 = smul.addr %s196, 8
      %s198 = scalar_lea.vmem %s0, %s197
      %p199 = pneg %p38
      %p200 = pneg %p35
      %p201 = pneg %p59
      %p202 = pneg %p56
      %p203 = pneg %p80
      %p204 = pneg %p77
      %p205 = pneg %p101
      %p206 = pneg %p98
      %p207 = pneg %p127
      %p208 = pneg %p124
      %p209 = scmp.lt.s32.totalorder %s17, 1
      %s210 = scalar_select %p209, %s17, 1
      %s211 = smul.addr %s210, 8
      %s212 = scalar_lea.vmem %s4, %s211
      %p213 = pneg %p153
      %p214 = pneg %p150
      %p215 = scmp.lt.s32.totalorder %s17, 1
      %s216 = scalar_select %p215, %s17, 1
      %s217 = smul.addr %s216, 2
      %s218 = scalar_lea.vmem %s5, %s217
      %p219 = scmp.lt.s32.totalorder %s17, 1
      %s220 = scalar_select %p219, %s17, 1
      %s221 = smul.addr %s220, 8
      %s222 = scalar_lea.vmem %s0, %s221
      %p223 = scmp.lt.s32.totalorder %s17, 1
      %s224 = scalar_select %p223, %s17, 1
      %s225 = smul.addr %s224, 8
      %s226 = scalar_lea.vmem %s4, %s225
      %p227 = scmp.lt.s32.totalorder %s17, 1
      %s228 = scalar_select %p227, %s17, 1
      %s229 = smul.addr %s228, 2
      %s230 = scalar_lea.vmem %s5, %s229
      %v231 = vld [vmem:[%s222] sm:$0xff]
      %v232 = vld [vmem:[%s1] sm:$0xff]
      %234 = vset.pattern.permute.xlu0 0
      %235 = vperm.xlu0 %234, %v232
      %v236 = vpop.permute.xlu0 %235
      %v238 = vmul.f32 %v231, %v236
      %v239 = vld [vmem:[%s2] sm:$0xff]
      %241 = vset.pattern.permute.xlu0 0
      %242 = vperm.xlu0 %241, %v239
      %v243 = vpop.permute.xlu0 %242
      %v245 = vadd.f32 %v238, %v243
      %v246 = vmax.f32 %v245, 0.0
      %247 = vxpose.xlu0.b32.start [1/16] %v246, 128
      %248 = vxpose.xlu0.b32.cont [2/16] 0.0, 128
      %249 = vxpose.xlu0.b32.cont [3/16] 0.0, 128
      %250 = vxpose.xlu0.b32.cont [4/16] 0.0, 128
      %251 = vxpose.xlu0.b32.cont [5/16] 0.0, 128
      %252 = vxpose.xlu0.b32.cont [6/16] 0.0, 128
      %253 = vxpose.xlu0.b32.cont [7/16] 0.0, 128
      %254 = vxpose.xlu0.b32.cont [8/16] 0.0, 128
      %255 = vxpose.xlu0.b32.cont [9/16] 0.0, 128
      %256 = vxpose.xlu0.b32.cont [10/16] 0.0, 128
      %257 = vxpose.xlu0.b32.cont [11/16] 0.0, 128
      %258 = vxpose.xlu0.b32.cont [12/16] 0.0, 128
      %259 = vxpose.xlu0.b32.cont [13/16] 0.0, 128
      %260 = vxpose.xlu0.b32.cont [14/16] 0.0, 128
      %261 = vxpose.xlu0.b32.cont [15/16] 0.0, 128
      %262 = vxpose.xlu0.b32.end [16/16] 0.0, 128
      %v263 = vpop.trf.xlu0
      %v264 = vpop.trf.xlu0
      %v265 = vpop.trf.xlu0
      %v266 = vpop.trf.xlu0
      %v267 = vpop.trf.xlu0
      %v268 = vpop.trf.xlu0
      %v269 = vpop.trf.xlu0
      %v270 = vpop.trf.xlu0
      %v271 = vpop.trf.xlu0
      %v272 = vpop.trf.xlu0
      %v273 = vpop.trf.xlu0
      %v274 = vpop.trf.xlu0
      %v275 = vpop.trf.xlu0
      %v276 = vpop.trf.xlu0
      %v277 = vpop.trf.xlu0
      %v278 = vpop.trf.xlu0
      %vm279 = vcmask 64512
      %280 = vst.msk [vmem:[#allocation2] sm:$0xff] %vm279, 0.0
      %vm281 = vcmask 58368
      %282 = vst.msk [vmem:[#allocation2 + $0x8] sm:$0x3] %vm281, 0.0
      %283 = vst.msk [vmem:[#allocation2 + $0x10] sm:$0xff] %vm279, 0.0
      %284 = vst.msk [vmem:[#allocation2 + $0x18] sm:$0x3] %vm281, 0.0
      %285 = vst.msk [vmem:[#allocation2 + $0x20] sm:$0xff] %vm279, 0.0
      %286 = vst.msk [vmem:[#allocation2 + $0x28] sm:$0x3] %vm281, 0.0
      %287 = vst.msk [vmem:[#allocation2 + $0x30] sm:$0xff] %vm279, 0.0
      %288 = vst.msk [vmem:[#allocation2 + $0x38] sm:$0x3] %vm281, 0.0
      %289 = vst.msk [vmem:[#allocation2 + $0x40] sm:$0xff] %vm279, 0.0
      %290 = vst.msk [vmem:[#allocation2 + $0x48] sm:$0x3] %vm281, 0.0
      %291 = vst.msk [vmem:[#allocation2 + $0x50] sm:$0xff] %vm279, 0.0
      %292 = vst.msk [vmem:[#allocation2 + $0x58] sm:$0x3] %vm281, 0.0
      %293 = vst.msk [vmem:[#allocation2 + $0x60] sm:$0xff] %vm279, 0.0
      %294 = vst.msk [vmem:[#allocation2 + $0x68] sm:$0x3] %vm281, 0.0
      %295 = vst.msk [vmem:[#allocation2 + $0x70] sm:$0xff] %vm279, 0.0
      %296 = vst.msk [vmem:[#allocation2 + $0x78] sm:$0x3] %vm281, 0.0
      %297 = vst.msk [vmem:[#allocation2 + $0x80] sm:$0xff] %vm279, 0.0
      %298 = vst.msk [vmem:[#allocation2 + $0x88] sm:$0x3] %vm281, 0.0
      %299 = vst.msk [vmem:[#allocation2 + $0x90] sm:$0xff] %vm279, 0.0
      %300 = vst.msk [vmem:[#allocation2 + $0x98] sm:$0x3] %vm281, 0.0
      %s301 = scalar_lea.vmem [#allocation2], 16
      %302 = vst.msk [vmem:[%s301 + $0x1] sm:$0xff] %vm279, %v263
      %303 = vst.msk [vmem:[%s301 + $0x11] sm:$0xff] %vm279, %v264
      %304 = vst.msk [vmem:[%s301 + $0x21] sm:$0xff] %vm279, %v265
      %305 = vst.msk [vmem:[%s301 + $0x31] sm:$0xff] %vm279, %v266
      %306 = vst.msk [vmem:[%s301 + $0x41] sm:$0xff] %vm279, %v267
      %307 = vst.msk [vmem:[%s301 + $0x51] sm:$0xff] %vm279, %v268
      %308 = vst.msk [vmem:[%s301 + $0x61] sm:$0xff] %vm279, %v269
      %309 = vst.msk [vmem:[%s301 + $0x71] sm:$0xff] %vm279, %v270
      %v310 = vld [vmem:[#allocation2] sm:$0xff]
      %v311 = vld [vmem:[#allocation2 + $0x10] sm:$0xff]
      %v312 = vld [vmem:[#allocation2 + $0x20] sm:$0xff]
      %v313 = vld [vmem:[#allocation2 + $0x30] sm:$0xff]
      %v314 = vld [vmem:[#allocation2 + $0x40] sm:$0xff]
      %v315 = vld [vmem:[#allocation2 + $0x50] sm:$0xff]
      %v316 = vld [vmem:[#allocation2 + $0x60] sm:$0xff]
      %v317 = vld [vmem:[#allocation2 + $0x70] sm:$0xff]
      %318 = vst.msk [vmem:[#allocation3] sm:$0xff] %vm279, %v310
      %319 = vst.msk [vmem:[#allocation3 + $0x8] sm:$0xff] %vm279, %v311
      %320 = vst.msk [vmem:[#allocation3 + $0x10] sm:$0xff] %vm279, %v312
      %321 = vst.msk [vmem:[#allocation3 + $0x18] sm:$0xff] %vm279, %v313
      %322 = vst.msk [vmem:[#allocation3 + $0x20] sm:$0xff] %vm279, %v314
      %323 = vst.msk [vmem:[#allocation3 + $0x28] sm:$0xff] %vm279, %v315
      %324 = vst.msk [vmem:[#allocation3 + $0x30] sm:$0xff] %vm279, %v316
      %325 = vst.msk [vmem:[#allocation3 + $0x38] sm:$0xff] %vm279, %v317
      %v326 = vld [vmem:[#allocation2 + $0x1] sm:$0xff]
      %v327 = vld [vmem:[#allocation2 + $0x11] sm:$0xff]
      %v328 = vld [vmem:[#allocation2 + $0x21] sm:$0xff]
      %v329 = vld [vmem:[#allocation2 + $0x31] sm:$0xff]
      %v330 = vld [vmem:[#allocation2 + $0x41] sm:$0xff]
      %v331 = vld [vmem:[#allocation2 + $0x51] sm:$0xff]
      %v332 = vld [vmem:[#allocation2 + $0x61] sm:$0xff]
      %v333 = vld [vmem:[#allocation2 + $0x71] sm:$0xff]
      %342 = vrot.lane.b32.xlu0 %v326, 8
      %v343 = vpop.permute.xlu0 %342
      %344 = vrot.lane.b32.xlu0 %v327, 8
      %v345 = vpop.permute.xlu0 %344
      %346 = vrot.lane.b32.xlu0 %v328, 8
      %v347 = vpop.permute.xlu0 %346
      %348 = vrot.lane.b32.xlu0 %v329, 8
      %v349 = vpop.permute.xlu0 %348
      %350 = vrot.lane.b32.xlu0 %v330, 8
      %v351 = vpop.permute.xlu0 %350
      %352 = vrot.lane.b32.xlu0 %v331, 8
      %v353 = vpop.permute.xlu0 %352
      %354 = vrot.lane.b32.xlu0 %v332, 8
      %v355 = vpop.permute.xlu0 %354
      %356 = vrot.lane.b32.xlu0 %v333, 8
      %v357 = vpop.permute.xlu0 %356
      %vm366 = vcmask 130112
      %367 = vst.msk [vmem:[#allocation3] sm:$0xff] %vm366, %v343
      %368 = vst.msk [vmem:[#allocation3 + $0x8] sm:$0xff] %vm366, %v345
      %369 = vst.msk [vmem:[#allocation3 + $0x10] sm:$0xff] %vm366, %v347
      %370 = vst.msk [vmem:[#allocation3 + $0x18] sm:$0xff] %vm366, %v349
      %371 = vst.msk [vmem:[#allocation3 + $0x20] sm:$0xff] %vm366, %v351
      %372 = vst.msk [vmem:[#allocation3 + $0x28] sm:$0xff] %vm366, %v353
      %373 = vst.msk [vmem:[#allocation3 + $0x30] sm:$0xff] %vm366, %v355
      %374 = vst.msk [vmem:[#allocation3 + $0x38] sm:$0xff] %vm366, %v357
      %v375 = vld [vmem:[#allocation2 + $0x2] sm:$0xff]
      %v376 = vld [vmem:[#allocation2 + $0x12] sm:$0xff]
      %v377 = vld [vmem:[#allocation2 + $0x22] sm:$0xff]
      %v378 = vld [vmem:[#allocation2 + $0x32] sm:$0xff]
      %v379 = vld [vmem:[#allocation2 + $0x42] sm:$0xff]
      %v380 = vld [vmem:[#allocation2 + $0x52] sm:$0xff]
      %v381 = vld [vmem:[#allocation2 + $0x62] sm:$0xff]
      %v382 = vld [vmem:[#allocation2 + $0x72] sm:$0xff]
      %391 = vrot.lane.b32.xlu0 %v375, 16
      %v392 = vpop.permute.xlu0 %391
      %393 = vrot.lane.b32.xlu0 %v376, 16
      %v394 = vpop.permute.xlu0 %393
      %395 = vrot.lane.b32.xlu0 %v377, 16
      %v396 = vpop.permute.xlu0 %395
      %397 = vrot.lane.b32.xlu0 %v378, 16
      %v398 = vpop.permute.xlu0 %397
      %399 = vrot.lane.b32.xlu0 %v379, 16
      %v400 = vpop.permute.xlu0 %399
      %401 = vrot.lane.b32.xlu0 %v380, 16
      %v402 = vpop.permute.xlu0 %401
      %403 = vrot.lane.b32.xlu0 %v381, 16
      %v404 = vpop.permute.xlu0 %403
      %405 = vrot.lane.b32.xlu0 %v382, 16
      %v406 = vpop.permute.xlu0 %405
      %vm415 = vcmask 195712
      %416 = vst.msk [vmem:[#allocation3] sm:$0xff] %vm415, %v392
      %417 = vst.msk [vmem:[#allocation3 + $0x8] sm:$0xff] %vm415, %v394
      %418 = vst.msk [vmem:[#allocation3 + $0x10] sm:$0xff] %vm415, %v396
      %419 = vst.msk [vmem:[#allocation3 + $0x18] sm:$0xff] %vm415, %v398
      %420 = vst.msk [vmem:[#allocation3 + $0x20] sm:$0xff] %vm415, %v400
      %421 = vst.msk [vmem:[#allocation3 + $0x28] sm:$0xff] %vm415, %v402
      %422 = vst.msk [vmem:[#allocation3 + $0x30] sm:$0xff] %vm415, %v404
      %423 = vst.msk [vmem:[#allocation3 + $0x38] sm:$0xff] %vm415, %v406
      %v424 = vld [vmem:[%s301] sm:$0xff]
      %v425 = vld [vmem:[%s301 + $0x10] sm:$0xff]
      %v426 = vld [vmem:[%s301 + $0x20] sm:$0xff]
      %v427 = vld [vmem:[%s301 + $0x30] sm:$0xff]
      %v428 = vld [vmem:[%s301 + $0x40] sm:$0xff]
      %v429 = vld [vmem:[%s301 + $0x50] sm:$0xff]
      %v430 = vld [vmem:[%s301 + $0x60] sm:$0xff]
      %v431 = vld [vmem:[%s301 + $0x70] sm:$0xff]
      %440 = vrot.lane.b32.xlu0 %v424, 24
      %v441 = vpop.permute.xlu0 %440
      %442 = vrot.lane.b32.xlu0 %v425, 24
      %v443 = vpop.permute.xlu0 %442
      %444 = vrot.lane.b32.xlu0 %v426, 24
      %v445 = vpop.permute.xlu0 %444
      %446 = vrot.lane.b32.xlu0 %v427, 24
      %v447 = vpop.permute.xlu0 %446
      %448 = vrot.lane.b32.xlu0 %v428, 24
      %v449 = vpop.permute.xlu0 %448
      %450 = vrot.lane.b32.xlu0 %v429, 24
      %v451 = vpop.permute.xlu0 %450
      %452 = vrot.lane.b32.xlu0 %v430, 24
      %v453 = vpop.permute.xlu0 %452
      %454 = vrot.lane.b32.xlu0 %v431, 24
      %v455 = vpop.permute.xlu0 %454
      %vm464 = vcmask 261312
      %465 = vst.msk [vmem:[#allocation3] sm:$0xff] %vm464, %v441
      %466 = vst.msk [vmem:[#allocation3 + $0x8] sm:$0xff] %vm464, %v443
      %467 = vst.msk [vmem:[#allocation3 + $0x10] sm:$0xff] %vm464, %v445
      %468 = vst.msk [vmem:[#allocation3 + $0x18] sm:$0xff] %vm464, %v447
      %469 = vst.msk [vmem:[#allocation3 + $0x20] sm:$0xff] %vm464, %v449
      %470 = vst.msk [vmem:[#allocation3 + $0x28] sm:$0xff] %vm464, %v451
      %471 = vst.msk [vmem:[#allocation3 + $0x30] sm:$0xff] %vm464, %v453
      %472 = vst.msk [vmem:[#allocation3 + $0x38] sm:$0xff] %vm464, %v455
      %v473 = vld [vmem:[%s301 + $0x1] sm:$0xff]
      %v474 = vld [vmem:[%s301 + $0x11] sm:$0xff]
      %v475 = vld [vmem:[%s301 + $0x21] sm:$0xff]
      %v476 = vld [vmem:[%s301 + $0x31] sm:$0xff]
      %v477 = vld [vmem:[%s301 + $0x41] sm:$0xff]
      %v478 = vld [vmem:[%s301 + $0x51] sm:$0xff]
      %v479 = vld [vmem:[%s301 + $0x61] sm:$0xff]
      %v480 = vld [vmem:[%s301 + $0x71] sm:$0xff]
      %489 = vrot.lane.b32.xlu0 %v473, 32
      %v490 = vpop.permute.xlu0 %489
      %491 = vrot.lane.b32.xlu0 %v474, 32
      %v492 = vpop.permute.xlu0 %491
      %493 = vrot.lane.b32.xlu0 %v475, 32
      %v494 = vpop.permute.xlu0 %493
      %495 = vrot.lane.b32.xlu0 %v476, 32
      %v496 = vpop.permute.xlu0 %495
      %497 = vrot.lane.b32.xlu0 %v477, 32
      %v498 = vpop.permute.xlu0 %497
      %499 = vrot.lane.b32.xlu0 %v478, 32
      %v500 = vpop.permute.xlu0 %499
      %501 = vrot.lane.b32.xlu0 %v479, 32
      %v502 = vpop.permute.xlu0 %501
      %503 = vrot.lane.b32.xlu0 %v480, 32
      %v504 = vpop.permute.xlu0 %503
      %vm513 = vcmask 326912
      %514 = vst.msk [vmem:[#allocation3] sm:$0xff] %vm513, %v490
      %515 = vst.msk [vmem:[#allocation3 + $0x8] sm:$0xff] %vm513, %v492
      %516 = vst.msk [vmem:[#allocation3 + $0x10] sm:$0xff] %vm513, %v494
      %517 = vst.msk [vmem:[#allocation3 + $0x18] sm:$0xff] %vm513, %v496
      %518 = vst.msk [vmem:[#allocation3 + $0x20] sm:$0xff] %vm513, %v498
      %519 = vst.msk [vmem:[#allocation3 + $0x28] sm:$0xff] %vm513, %v500
      %520 = vst.msk [vmem:[#allocation3 + $0x30] sm:$0xff] %vm513, %v502
      %521 = vst.msk [vmem:[#allocation3 + $0x38] sm:$0xff] %vm513, %v504
      %v522 = vld [vmem:[%s301 + $0x2] sm:$0xff]
      %v523 = vld [vmem:[%s301 + $0x12] sm:$0xff]
      %v524 = vld [vmem:[%s301 + $0x22] sm:$0xff]
      %v525 = vld [vmem:[%s301 + $0x32] sm:$0xff]
      %v526 = vld [vmem:[%s301 + $0x42] sm:$0xff]
      %v527 = vld [vmem:[%s301 + $0x52] sm:$0xff]
      %v528 = vld [vmem:[%s301 + $0x62] sm:$0xff]
      %v529 = vld [vmem:[%s301 + $0x72] sm:$0xff]
      %538 = vrot.lane.b32.xlu0 %v522, 40
      %v539 = vpop.permute.xlu0 %538
      %540 = vrot.lane.b32.xlu0 %v523, 40
      %v541 = vpop.permute.xlu0 %540
      %542 = vrot.lane.b32.xlu0 %v524, 40
      %v543 = vpop.permute.xlu0 %542
      %544 = vrot.lane.b32.xlu0 %v525, 40
      %v545 = vpop.permute.xlu0 %544
      %546 = vrot.lane.b32.xlu0 %v526, 40
      %v547 = vpop.permute.xlu0 %546
      %548 = vrot.lane.b32.xlu0 %v527, 40
      %v549 = vpop.permute.xlu0 %548
      %550 = vrot.lane.b32.xlu0 %v528, 40
      %v551 = vpop.permute.xlu0 %550
      %552 = vrot.lane.b32.xlu0 %v529, 40
      %v553 = vpop.permute.xlu0 %552
      %vm562 = vcmask 392512
      %563 = vst.msk [vmem:[#allocation3] sm:$0xff] %vm562, %v539
      %564 = vst.msk [vmem:[#allocation3 + $0x8] sm:$0xff] %vm562, %v541
      %565 = vst.msk [vmem:[#allocation3 + $0x10] sm:$0xff] %vm562, %v543
      %566 = vst.msk [vmem:[#allocation3 + $0x18] sm:$0xff] %vm562, %v545
      %567 = vst.msk [vmem:[#allocation3 + $0x20] sm:$0xff] %vm562, %v547
      %568 = vst.msk [vmem:[#allocation3 + $0x28] sm:$0xff] %vm562, %v549
      %569 = vst.msk [vmem:[#allocation3 + $0x30] sm:$0xff] %vm562, %v551
      %570 = vst.msk [vmem:[#allocation3 + $0x38] sm:$0xff] %vm562, %v553
      %s571 = scalar_lea.vmem [#allocation2], 32
      %v572 = vld [vmem:[%s571] sm:$0xff]
      %v573 = vld [vmem:[%s571 + $0x10] sm:$0xff]
      %v574 = vld [vmem:[%s571 + $0x20] sm:$0xff]
      %v575 = vld [vmem:[%s571 + $0x30] sm:$0xff]
      %v576 = vld [vmem:[%s571 + $0x40] sm:$0xff]
      %v577 = vld [vmem:[%s571 + $0x50] sm:$0xff]
      %v578 = vld [vmem:[%s571 + $0x60] sm:$0xff]
      %v579 = vld [vmem:[%s571 + $0x70] sm:$0xff]
      %588 = vrot.lane.b32.xlu0 %v572, 48
      %v589 = vpop.permute.xlu0 %588
      %590 = vrot.lane.b32.xlu0 %v573, 48
      %v591 = vpop.permute.xlu0 %590
      %592 = vrot.lane.b32.xlu0 %v574, 48
      %v593 = vpop.permute.xlu0 %592
      %594 = vrot.lane.b32.xlu0 %v575, 48
      %v595 = vpop.permute.xlu0 %594
      %596 = vrot.lane.b32.xlu0 %v576, 48
      %v597 = vpop.permute.xlu0 %596
      %598 = vrot.lane.b32.xlu0 %v577, 48
      %v599 = vpop.permute.xlu0 %598
      %600 = vrot.lane.b32.xlu0 %v578, 48
      %v601 = vpop.permute.xlu0 %600
      %602 = vrot.lane.b32.xlu0 %v579, 48
      %v603 = vpop.permute.xlu0 %602
      %vm612 = vcmask 458112
      %613 = vst.msk [vmem:[#allocation3] sm:$0xff] %vm612, %v589
      %614 = vst.msk [vmem:[#allocation3 + $0x8] sm:$0xff] %vm612, %v591
      %615 = vst.msk [vmem:[#allocation3 + $0x10] sm:$0xff] %vm612, %v593
      %616 = vst.msk [vmem:[#allocation3 + $0x18] sm:$0xff] %vm612, %v595
      %617 = vst.msk [vmem:[#allocation3 + $0x20] sm:$0xff] %vm612, %v597
      %618 = vst.msk [vmem:[#allocation3 + $0x28] sm:$0xff] %vm612, %v599
      %619 = vst.msk [vmem:[#allocation3 + $0x30] sm:$0xff] %vm612, %v601
      %620 = vst.msk [vmem:[#allocation3 + $0x38] sm:$0xff] %vm612, %v603
      %v621 = vld [vmem:[%s571 + $0x1] sm:$0xff]
      %v622 = vld [vmem:[%s571 + $0x11] sm:$0xff]
      %v623 = vld [vmem:[%s571 + $0x21] sm:$0xff]
      %v624 = vld [vmem:[%s571 + $0x31] sm:$0xff]
      %v625 = vld [vmem:[%s571 + $0x41] sm:$0xff]
      %v626 = vld [vmem:[%s571 + $0x51] sm:$0xff]
      %v627 = vld [vmem:[%s571 + $0x61] sm:$0xff]
      %v628 = vld [vmem:[%s571 + $0x71] sm:$0xff]
      %637 = vrot.lane.b32.xlu0 %v621, 56
      %v638 = vpop.permute.xlu0 %637
      %639 = vrot.lane.b32.xlu0 %v622, 56
      %v640 = vpop.permute.xlu0 %639
      %641 = vrot.lane.b32.xlu0 %v623, 56
      %v642 = vpop.permute.xlu0 %641
      %643 = vrot.lane.b32.xlu0 %v624, 56
      %v644 = vpop.permute.xlu0 %643
      %645 = vrot.lane.b32.xlu0 %v625, 56
      %v646 = vpop.permute.xlu0 %645
      %647 = vrot.lane.b32.xlu0 %v626, 56
      %v648 = vpop.permute.xlu0 %647
      %649 = vrot.lane.b32.xlu0 %v627, 56
      %v650 = vpop.permute.xlu0 %649
      %651 = vrot.lane.b32.xlu0 %v628, 56
      %v652 = vpop.permute.xlu0 %651
      %vm661 = vcmask 523712
      %662 = vst.msk [vmem:[#allocation3] sm:$0xff] %vm661, %v638
      %663 = vst.msk [vmem:[#allocation3 + $0x8] sm:$0xff] %vm661, %v640
      %664 = vst.msk [vmem:[#allocation3 + $0x10] sm:$0xff] %vm661, %v642
      %665 = vst.msk [vmem:[#allocation3 + $0x18] sm:$0xff] %vm661, %v644
      %666 = vst.msk [vmem:[#allocation3 + $0x20] sm:$0xff] %vm661, %v646
      %667 = vst.msk [vmem:[#allocation3 + $0x28] sm:$0xff] %vm661, %v648
      %668 = vst.msk [vmem:[#allocation3 + $0x30] sm:$0xff] %vm661, %v650
      %669 = vst.msk [vmem:[#allocation3 + $0x38] sm:$0xff] %vm661, %v652
      %v670 = vld [vmem:[%s571 + $0x2] sm:$0xff]
      %v671 = vld [vmem:[%s571 + $0x12] sm:$0xff]
      %v672 = vld [vmem:[%s571 + $0x22] sm:$0xff]
      %v673 = vld [vmem:[%s571 + $0x32] sm:$0xff]
      %v674 = vld [vmem:[%s571 + $0x42] sm:$0xff]
      %v675 = vld [vmem:[%s571 + $0x52] sm:$0xff]
      %v676 = vld [vmem:[%s571 + $0x62] sm:$0xff]
      %v677 = vld [vmem:[%s571 + $0x72] sm:$0xff]
      %686 = vrot.lane.b32.xlu0 %v670, 64
      %v687 = vpop.permute.xlu0 %686
      %688 = vrot.lane.b32.xlu0 %v671, 64
      %v689 = vpop.permute.xlu0 %688
      %690 = vrot.lane.b32.xlu0 %v672, 64
      %v691 = vpop.permute.xlu0 %690
      %692 = vrot.lane.b32.xlu0 %v673, 64
      %v693 = vpop.permute.xlu0 %692
      %694 = vrot.lane.b32.xlu0 %v674, 64
      %v695 = vpop.permute.xlu0 %694
      %696 = vrot.lane.b32.xlu0 %v675, 64
      %v697 = vpop.permute.xlu0 %696
      %698 = vrot.lane.b32.xlu0 %v676, 64
      %v699 = vpop.permute.xlu0 %698
      %700 = vrot.lane.b32.xlu0 %v677, 64
      %v701 = vpop.permute.xlu0 %700
      %vm710 = vcmask 589312
      %711 = vst.msk [vmem:[#allocation3] sm:$0xff] %vm710, %v687
      %712 = vst.msk [vmem:[#allocation3 + $0x8] sm:$0xff] %vm710, %v689
      %713 = vst.msk [vmem:[#allocation3 + $0x10] sm:$0xff] %vm710, %v691
      %714 = vst.msk [vmem:[#allocation3 + $0x18] sm:$0xff] %vm710, %v693
      %715 = vst.msk [vmem:[#allocation3 + $0x20] sm:$0xff] %vm710, %v695
      %716 = vst.msk [vmem:[#allocation3 + $0x28] sm:$0xff] %vm710, %v697
      %717 = vst.msk [vmem:[#allocation3 + $0x30] sm:$0xff] %vm710, %v699
      %718 = vst.msk [vmem:[#allocation3 + $0x38] sm:$0xff] %vm710, %v701
      %v719 = vld [vmem:[#allocation3] sm:$0xff]
      %v720 = vld [vmem:[#allocation3 + $0x8] sm:$0xff]
      %v721 = vld [vmem:[#allocation3 + $0x10] sm:$0xff]
      %v722 = vld [vmem:[#allocation3 + $0x18] sm:$0xff]
      %v723 = vld [vmem:[#allocation3 + $0x20] sm:$0xff]
      %v724 = vld [vmem:[#allocation3 + $0x28] sm:$0xff]
      %v725 = vld [vmem:[#allocation3 + $0x30] sm:$0xff]
      %v726 = vld [vmem:[#allocation3 + $0x38] sm:$0xff]
      %v727 = vld [vmem:[%s3] sm:$0xff]
      %v728 = vld [vmem:[%s3 + $0x8] sm:$0xff]
      %v729 = vld [vmem:[%s3 + $0x10] sm:$0xff]
      %v730 = vld [vmem:[%s3 + $0x18] sm:$0xff]
      %v731 = vld [vmem:[%s3 + $0x20] sm:$0xff]
      %v732 = vld [vmem:[%s3 + $0x28] sm:$0xff]
      %v733 = vld [vmem:[%s3 + $0x30] sm:$0xff]
      %v734 = vld [vmem:[%s3 + $0x38] sm:$0xff]
      %v735 = vld [vmem:[%s3 + $0x40] sm:$0xff]
      %vm736 = vcmask 588800
      %v738 = vsel %vm736, %v719, 0
      %v741 = vsel %vm736, %v720, 0
      %v744 = vsel %vm736, %v721, 0
      %v747 = vsel %vm736, %v722, 0
      %v750 = vsel %vm736, %v723, 0
      %v753 = vsel %vm736, %v724, 0
      %v756 = vsel %vm736, %v725, 0
      %v759 = vsel %vm736, %v726, 0
      %761 = vmatprep.subr.mxu0 0.0
      %762 = vmatpush1.msra.mxu0 0.0
      %763 = vmatprep.subr.mxu0 0.0
      %764 = vmatpush1.msra.mxu0 0.0
      %765 = vmatprep.subr.mxu0 0.0
      %766 = vmatpush1.msra.mxu0 0.0
      %767 = vmatprep.subr.mxu0 0.0
      %768 = vmatpush1.msra.mxu0 0.0
      %769 = vmatprep.subr.mxu0 0.0
      %770 = vmatpush1.msra.mxu0 0.0
      %771 = vmatprep.subr.mxu0 0.0
      %772 = vmatpush1.msra.mxu0 0.0
      %773 = vmatprep.subr.mxu0 0.0
      %774 = vmatpush1.msra.mxu0 0.0
      %775 = vmatprep.subr.mxu0 0.0
      %776 = vmatpush1.msra.mxu0 %v735
      %777 = vmatprep.subr.mxu0 0.0
      %778 = vmatpush1.msra.mxu0 %v734
      %779 = vmatprep.subr.mxu0 0.0
      %780 = vmatpush1.msra.mxu0 %v733
      %781 = vmatprep.subr.mxu0 0.0
      %782 = vmatpush1.msra.mxu0 %v732
      %783 = vmatprep.subr.mxu0 0.0
      %784 = vmatpush1.msra.mxu0 %v731
      %785 = vmatprep.subr.mxu0 0.0
      %786 = vmatpush1.msra.mxu0 %v730
      %787 = vmatprep.subr.mxu0 0.0
      %788 = vmatpush1.msra.mxu0 %v729
      %789 = vmatprep.subr.mxu0 0.0
      %790 = vmatpush1.msra.mxu0 %v728
      %791 = vmatprep.subr.mxu0 0.0
      %792 = vmatpush1.msra.mxu0 %v727
      %793 = vmatprep.subr.mxu0 0.0
      %794 = vmatpush2.msra.mxu0 0.0
      %795 = vmatprep.subr.mxu0 0.0
      %796 = vmatpush2.msra.mxu0 0.0
      %797 = vmatprep.subr.mxu0 0.0
      %798 = vmatpush2.msra.mxu0 0.0
      %799 = vmatprep.subr.mxu0 0.0
      %800 = vmatpush2.msra.mxu0 0.0
      %801 = vmatprep.subr.mxu0 0.0
      %802 = vmatpush2.msra.mxu0 0.0
      %803 = vmatprep.subr.mxu0 0.0
      %804 = vmatpush2.msra.mxu0 0.0
      %805 = vmatprep.subr.mxu0 0.0
      %806 = vmatpush2.msra.mxu0 0.0
      %807 = vmatprep.subr.mxu0 0.0
      %808 = vmatpush2.msra.mxu0 0.0
      %809 = vmatprep.subr.mxu0 0.0
      %810 = vmatpush2.msra.mxu0 0.0
      %811 = vmatprep.subr.mxu0 0.0
      %812 = vmatpush2.msra.mxu0 0.0
      %813 = vmatprep.subr.mxu0 0.0
      %814 = vmatpush2.msra.mxu0 0.0
      %815 = vmatprep.subr.mxu0 0.0
      %816 = vmatpush2.msra.mxu0 0.0
      %817 = vmatprep.subr.mxu0 0.0
      %818 = vmatpush2.msra.mxu0 0.0
      %819 = vmatprep.subr.mxu0 0.0
      %820 = vmatpush2.msra.mxu0 0.0
      %821 = vmatprep.subr.mxu0 0.0
      %822 = vmatpush2.msra.mxu0 0.0
      %823 = vmatprep.subr.mxu0 0.0
      %824 = vmatpush2.msra.mxu0 0.0
      %825 = vmatprep.mubr.f32.mxu0 0.0
      %826 = vmatmul.mubr.f32.gmra.mxu0 %v738
      %v827 = vpop.f32.mrf.mxu0
      %v828 = vadd.f32 0.0, %v827
      %v829 = vpop.f32.mrf.mxu0
      %830 = vmatprep.mubr.f32.mxu0 0.0
      %831 = vmatmul.mubr.f32.gmra.mxu0 %v741
      %v832 = vpop.f32.mrf.mxu0
      %v833 = vadd.f32 0.0, %v832
      %v834 = vpop.f32.mrf.mxu0
      %835 = vmatprep.mubr.f32.mxu0 0.0
      %836 = vmatmul.mubr.f32.gmra.mxu0 %v744
      %v837 = vpop.f32.mrf.mxu0
      %v838 = vadd.f32 0.0, %v837
      %v839 = vpop.f32.mrf.mxu0
      %840 = vmatprep.mubr.f32.mxu0 0.0
      %841 = vmatmul.mubr.f32.gmra.mxu0 %v747
      %v842 = vpop.f32.mrf.mxu0
      %v843 = vadd.f32 0.0, %v842
      %v844 = vpop.f32.mrf.mxu0
      %845 = vmatprep.mubr.f32.mxu0 0.0
      %846 = vmatmul.mubr.f32.gmra.mxu0 %v750
      %v847 = vpop.f32.mrf.mxu0
      %v848 = vadd.f32 0.0, %v847
      %v849 = vpop.f32.mrf.mxu0
      %850 = vmatprep.mubr.f32.mxu0 0.0
      %851 = vmatmul.mubr.f32.gmra.mxu0 %v753
      %v852 = vpop.f32.mrf.mxu0
      %v853 = vadd.f32 0.0, %v852
      %v854 = vpop.f32.mrf.mxu0
      %855 = vmatprep.mubr.f32.mxu0 0.0
      %856 = vmatmul.mubr.f32.gmra.mxu0 %v756
      %v857 = vpop.f32.mrf.mxu0
      %v858 = vadd.f32 0.0, %v857
      %v859 = vpop.f32.mrf.mxu0
      %860 = vmatprep.mubr.f32.mxu0 0.0
      %861 = vmatmul.mubr.f32.gmra.mxu0 %v759
      %v862 = vpop.f32.mrf.mxu0
      %v863 = vadd.f32 0.0, %v862
      %v864 = vpop.f32.mrf.mxu0
      %865 = vdwg.mxu0
      %v866 = vsel %vm279, %v828, 0.0
      %v867 = vsel %vm279, %v833, 0.0
      %v868 = vadd.f32 %v866, %v867
      %v869 = vsel %vm279, %v838, 0.0
      %v870 = vadd.f32 %v868, %v869
      %v871 = vsel %vm279, %v843, 0.0
      %v872 = vadd.f32 %v870, %v871
      %v873 = vsel %vm279, %v848, 0.0
      %v874 = vadd.f32 %v872, %v873
      %v875 = vsel %vm279, %v853, 0.0
      %v876 = vadd.f32 %v874, %v875
      %v877 = vsel %vm279, %v858, 0.0
      %v878 = vadd.f32 %v876, %v877
      %v879 = vsel %vm279, %v863, 0.0
      %v880 = vadd.f32 %v878, %v879
      %v881 = vrot.slane %v880, 4
      %v882 = vadd.f32 %v880, %v881
      %v883 = vrot.slane %v882, 2
      %v884 = vadd.f32 %v882, %v883
      %v885 = vrot.slane %v884, 1
      %v886 = vadd.f32 %v884, %v885
      %vm887 = vcmask 57344
      %888 = vst.msk [vmem:[%s230] sm:$0x1] %vm887, %v886
      %v889 = vmul.f32 %v828, %v828
      %v890 = vmul.f32 %v833, %v833
      %v891 = vmul.f32 %v838, %v838
      %v892 = vmul.f32 %v843, %v843
      %v893 = vmul.f32 %v848, %v848
      %v894 = vmul.f32 %v853, %v853
      %v895 = vmul.f32 %v858, %v858
      %v896 = vmul.f32 %v863, %v863
      %v897 = vsel %vm279, %v889, 0.0
      %v898 = vsel %vm279, %v890, 0.0
      %v899 = vadd.f32 %v897, %v898
      %v900 = vsel %vm279, %v891, 0.0
      %v901 = vadd.f32 %v899, %v900
      %v902 = vsel %vm279, %v892, 0.0
      %v903 = vadd.f32 %v901, %v902
      %v904 = vsel %vm279, %v893, 0.0
      %v905 = vadd.f32 %v903, %v904
      %v906 = vsel %vm279, %v894, 0.0
      %v907 = vadd.f32 %v905, %v906
      %v908 = vsel %vm279, %v895, 0.0
      %v909 = vadd.f32 %v907, %v908
      %v910 = vsel %vm279, %v896, 0.0
      %v911 = vadd.f32 %v909, %v910
      %v912 = vrot.slane %v911, 4
      %v913 = vadd.f32 %v911, %v912
      %v914 = vrot.slane %v913, 2
      %v915 = vadd.f32 %v913, %v914
      %v916 = vrot.slane %v915, 1
      %v917 = vadd.f32 %v915, %v916
      %918 = vst.msk [vmem:[%s230 + $0x1] sm:$0x1] %vm887, %v917
      %919 = vxpose.xlu0.b32.start [1/16] %v828, 128
      %920 = vxpose.xlu0.b32.cont [2/16] %v833, 128
      %921 = vxpose.xlu0.b32.cont [3/16] %v838, 128
      %922 = vxpose.xlu0.b32.cont [4/16] %v843, 128
      %923 = vxpose.xlu0.b32.cont [5/16] %v848, 128
      %924 = vxpose.xlu0.b32.cont [6/16] %v853, 128
      %925 = vxpose.xlu0.b32.cont [7/16] %v858, 128
      %926 = vxpose.xlu0.b32.cont [8/16] %v863, 128
      %927 = vxpose.xlu0.b32.cont [9/16] 0.0, 128
      %928 = vxpose.xlu0.b32.cont [10/16] 0.0, 128
      %929 = vxpose.xlu0.b32.cont [11/16] 0.0, 128
      %930 = vxpose.xlu0.b32.cont [12/16] 0.0, 128
      %931 = vxpose.xlu0.b32.cont [13/16] 0.0, 128
      %932 = vxpose.xlu0.b32.cont [14/16] 0.0, 128
      %933 = vxpose.xlu0.b32.cont [15/16] 0.0, 128
      %934 = vxpose.xlu0.b32.end [16/16] 0.0, 128
      %v935 = vpop.trf.xlu0
      %v936 = vpop.trf.xlu0
      %v937 = vpop.trf.xlu0
      %v938 = vpop.trf.xlu0
      %v939 = vpop.trf.xlu0
      %v940 = vpop.trf.xlu0
      %v941 = vpop.trf.xlu0
      %v942 = vpop.trf.xlu0
      %v943 = vpop.trf.xlu0
      %v944 = vpop.trf.xlu0
      %v945 = vpop.trf.xlu0
      %v946 = vpop.trf.xlu0
      %v947 = vpop.trf.xlu0
      %v948 = vpop.trf.xlu0
      %v949 = vpop.trf.xlu0
      %v950 = vpop.trf.xlu0
      %vm951 = vcmask 523264
      %952 = vst.msk [vmem:[%s226] sm:$0xff] %vm951, %v935
      %p953 = scmp.lt.s32.totalorder %s17, 1
      %s954 = scalar_select %p953, %s17, 1
      %s955 = smul.addr %s954, 8
      %s956 = scalar_lea.vmem %s4, %s955
      %p957 = scmp.lt.s32.totalorder %s17, 1
      %s958 = scalar_select %p957, %s17, 1
      %s959 = smul.addr %s958, 2
      %s960 = scalar_lea.vmem %s5, %s959
      // Predicated region
      $region37: #{double_conv2_forward.4} parent=35 // pred_check
        %p961 = pneg %p124
      $region38: #{double_conv2_forward.4} parent=35 // pred_check_branch
        %963 = sbr.rel (%p961) target = $region40
      $region39: #{double_conv2_forward.4} parent=35 // pred_region
        _
      $region40: #{double_conv2_forward.4} parent=35 // pred_fallthru
        _
      // Predicated region
      $region41: #{double_conv2_forward.4} parent=35 // pred_check
        %p964 = pneg %p150
      $region42: #{double_conv2_forward.4} parent=35 // pred_check_branch
        %966 = sbr.rel (%p964) target = $region44
      $region43: #{double_conv2_forward.4} parent=35 // pred_region
        _
      $region44: #{double_conv2_forward.4} parent=35 // pred_fallthru
        _
    $region36: #{double_conv2_forward.4} parent=5 // pred_fallthru
      _
    %p967 = scmp.le.s32.totalorder 2, %s12
    // Predicated region
    $region45: #{double_conv2_forward.4} parent=5 // pred_check
      %p968 = pneg %p967
    $region46: #{double_conv2_forward.4} parent=5 // pred_check_branch
      %970 = sbr.rel (%p968) target = $region48
    $region47: #{double_conv2_forward.4} parent=5 // pred_region
      %s971 = ssub.s32 %s12, 2
      // Predicated region
      $region49: #{double_conv2_forward.4} parent=47 // pred_check
        %p972 = pneg %p130
      $region50: #{double_conv2_forward.4} parent=47 // pred_check_branch
        %974 = sbr.rel (%p972) target = $region52
      $region51: #{double_conv2_forward.4} parent=47 // pred_region
        %p975 = scmp.lt.s32.totalorder %s18, 1
        %s976 = scalar_select %p975, %s18, 1
        %s977 = smul.addr %s976, 8
        %s978 = scalar_lea.vmem %s4, %s977
      $region52: #{double_conv2_forward.4} parent=47 // pred_fallthru
        _
      // Predicated region
      $region53: #{double_conv2_forward.4} parent=47 // pred_check
        %p979 = pneg %p156
      $region54: #{double_conv2_forward.4} parent=47 // pred_check_branch
        %981 = sbr.rel (%p979) target = $region56
      $region55: #{double_conv2_forward.4} parent=47 // pred_region
        %p982 = scmp.lt.s32.totalorder %s18, 1
        %s983 = scalar_select %p982, %s18, 1
        %s984 = smul.addr %s983, 2
        %s985 = scalar_lea.vmem %s5, %s984
      $region56: #{double_conv2_forward.4} parent=47 // pred_fallthru
        _
    $region48: #{double_conv2_forward.4} parent=5 // pred_fallthru
      _
  $region6: #{double_conv2_forward.4} parent=0 // loop_footer
    %s16 = sadd.s32 1, %s12
  $region7: #{double_conv2_forward.4} parent=0 // loop_footer_branch
    %11 = sbr.rel target = $region3
  $region8: #{double_conv2_forward.4} parent=0 // loop_exit
    _

</llo_original>
